<compile_context>
chip_gen: v6e
topology: v6e:2x2x1
jax: 0.10.0
libtpu: 0.0.40
codegen_flags: <defaults>
</compile_context>

<pallas_src>
import jax
import jax.numpy as jnp
from jax.experimental import pallas as pl
from jax.experimental.pallas import tpu as pltpu

INPUT_DIM = 3
K1_PAD = 8                       # layer-1 contraction padded to one sublane tile
HIDDEN_DIMS = [64, 128, 256, 256]
OUTPUT_DIM = 14
_DIMS = [INPUT_DIM] + HIDDEN_DIMS + [OUTPUT_DIM]


def mlp_kernel(x_ref,
               w1_ref, b1_ref,
               w2_ref, b2_ref,
               w3_ref, b3_ref,
               w4_ref, b4_ref,
               wo_ref, bo_ref,
               out_ref):
    # x_ref: (K1_PAD, tile_n) f32, rows INPUT_DIM.. are zero padding.
    x = x_ref[...]

    # ---- layer 1: (64, 8) @ (8, tile_n) on the MXU, pure f32.
    h = jnp.dot(w1_ref[...], x, preferred_element_type=jnp.float32) + b1_ref[...]
    h = jnp.maximum(h, 0.0)

    # ---- layers 2..4: bf16 MXU inputs, f32 accumulation, f32 bias/ReLU.
    h = jnp.dot(w2_ref[...], h.astype(jnp.bfloat16),
                preferred_element_type=jnp.float32) + b2_ref[...]
    h = jnp.maximum(h, 0.0)
    h = jnp.dot(w3_ref[...], h.astype(jnp.bfloat16),
                preferred_element_type=jnp.float32) + b3_ref[...]
    h = jnp.maximum(h, 0.0)
    h = jnp.dot(w4_ref[...], h.astype(jnp.bfloat16),
                preferred_element_type=jnp.float32) + b4_ref[...]
    h = jnp.maximum(h, 0.0)

    # ---- output layer: Linear, no activation. (14, tile_n) lane-dense store.
    y = jnp.dot(wo_ref[...], h.astype(jnp.bfloat16),
                preferred_element_type=jnp.float32) + bo_ref[...]
    out_ref[...] = y.astype(out_ref.dtype)


def _full_spec(shape):
    # Untiled operand: the whole (small) weight/bias is one block with a
    # constant block index -> DMA'd once, VMEM-resident across the grid.
    return pl.BlockSpec(shape, lambda i: (0, 0))


def _pick_tile_n(n):
    # Large tiles to amortize per-step pipeline overhead, but >= 2 grid steps
    # when N allows it so both v7x TensorCores get work.  Multiple of 128.
    target = max((n + 1) // 2, 128)
    return min(2048, ((target + 127) // 128) * 128)


@jax.jit
def mlp_forward(x, params):
    """x: [N, 3] float32 -> [N, 14] float32.

    params: flat tuple (w1, b1, w2, b2, w3, b3, w4, b4, wo, bo).
      * weights are (out_dim, in_dim) (== PyTorch W); w1 is zero-padded to
        (64, K1_PAD) and kept f32; w2..wo are bf16 (MXU inputs).
      * biases are (out_dim, 1), f32.
    """
    n, d = x.shape
    assert d == INPUT_DIM
    tile_n = _pick_tile_n(n)
    grid_n = pl.cdiv(n, tile_n)

    # Lane-dense layout: rows of x go to the 128-lane axis; the layer-1
    # contraction dim is zero-padded 3 -> 8 so layer 1 runs on the MXU.
    xt = jnp.pad(x.T, ((0, K1_PAD - INPUT_DIM), (0, 0)))      # (8, n) f32

    weight_specs = [_full_spec(p.shape) for p in params]

    flops = 2 * n * sum(_DIMS[i] * _DIMS[i + 1] for i in range(len(_DIMS) - 1))
    bytes_accessed = (n * (INPUT_DIM + OUTPUT_DIM) * 4
                      + sum(p.size * p.dtype.itemsize for p in params))

    out_t = pl.pallas_call(
        mlp_kernel,
        out_shape=jax.ShapeDtypeStruct((OUTPUT_DIM, n), jnp.float32),
        grid_spec=pltpu.PrefetchScalarGridSpec(
            num_scalar_prefetch=0,
            grid=(grid_n,),
            in_specs=[pl.BlockSpec((K1_PAD, tile_n), lambda i: (0, i))]
                     + weight_specs,
            out_specs=pl.BlockSpec((OUTPUT_DIM, tile_n), lambda i: (0, i)),
        ),
        compiler_params=pltpu.CompilerParams(
            dimension_semantics=("parallel",)),
        cost_estimate=pl.CostEstimate(
            flops=flops, transcendentals=0, bytes_accessed=bytes_accessed),
    )(xt, *params)
    return out_t.T                                            # (n, 14)


def init_params(key):
    """PyTorch nn.Linear-style init.  Weights stored as (out_dim, in_dim)
    (== PyTorch W), biases as (out_dim, 1).  Layer-1 weight zero-padded to
    (64, K1_PAD) and kept f32; layers 2..5 weights stored bf16; biases f32."""
    params = []
    for i in range(len(_DIMS) - 1):
        fan_in, fan_out = _DIMS[i], _DIMS[i + 1]
        key, kw, kb = jax.random.split(key, 3)
        bound = 1.0 / (fan_in ** 0.5)
        w = jax.random.uniform(kw, (fan_out, fan_in), jnp.float32, -bound, bound)
        b = jax.random.uniform(kb, (fan_out, 1), jnp.float32, -bound, bound)
        if i == 0:
            w = jnp.pad(w, ((0, 0), (0, K1_PAD - fan_in)))    # (64, 8)
        else:
            w = w.astype(jnp.bfloat16)
        params += [w, b]
    return tuple(params)


def mlp_reference_f32(x, params):
    """Pure-f32 reference matching the PyTorch module (bf16 weights upcast)."""
    w1, b1 = params[0], params[1]
    h = jnp.maximum(x @ w1[:, :INPUT_DIM].T + b1.T, 0.0)
    for i in range(1, len(HIDDEN_DIMS)):
        w, b = params[2 * i], params[2 * i + 1]
        h = jnp.maximum(h @ w.astype(jnp.float32).T + b.T, 0.0)
    wo, bo = params[-2], params[-1]
    return h @ wo.astype(jnp.float32).T + bo.T


def mlp_reference_mixed(x, params):
    """Reference mirroring the kernel's mixed precision (tight tolerance)."""
    w1, b1 = params[0], params[1]
    h = jnp.maximum(
        jnp.dot(x, w1[:, :INPUT_DIM].T, preferred_element_type=jnp.float32,
                precision=jax.lax.Precision.HIGHEST) + b1.T, 0.0)
    for i in range(1, len(HIDDEN_DIMS)):
        w, b = params[2 * i], params[2 * i + 1]
        h = jnp.maximum(
            jnp.dot(h.astype(jnp.bfloat16), w.T,
                    preferred_element_type=jnp.float32) + b.T, 0.0)
    wo, bo = params[-2], params[-1]
    return jnp.dot(h.astype(jnp.bfloat16), wo.T,
                   preferred_element_type=jnp.float32) + bo.T


if __name__ == "__main__":
    key = jax.random.PRNGKey(0)
    kx, kp = jax.random.split(key)

    # N deliberately not a multiple of the picked tile (512 here) so the
    # masked partial tail block and the 2-step grid are both exercised.
    N = 1000
    x = jax.random.normal(kx, (N, INPUT_DIM), dtype=jnp.float32)
    params = init_params(kp)

    out = jax.block_until_ready(mlp_forward(x, params))
    assert out.shape == (N, OUTPUT_DIM)

    ref_mixed = mlp_reference_mixed(x, params)
    ref_f32 = mlp_reference_f32(x, params)
    assert jnp.allclose(out, ref_mixed, atol=2e-3, rtol=2e-3), \
        "mismatch vs mixed-precision reference"
    assert jnp.allclose(out, ref_f32, atol=5e-2, rtol=5e-2), \
        "mismatch vs f32 reference"

    print("KERNEL_OK")
</pallas_src>

<mosaic_0001>
module attributes {stable_mosaic.version = 11 : i64} {
  func.func @mlp_kernel(%arg0: i32, %arg1: memref<8x512xf32, #tpu.memory_space<vmem>>, %arg2: memref<64x8xf32, #tpu.memory_space<vmem>>, %arg3: memref<64x1xf32, #tpu.memory_space<vmem>>, %arg4: memref<128x64xbf16, #tpu.memory_space<vmem>>, %arg5: memref<128x1xf32, #tpu.memory_space<vmem>>, %arg6: memref<256x128xbf16, #tpu.memory_space<vmem>>, %arg7: memref<256x1xf32, #tpu.memory_space<vmem>>, %arg8: memref<256x256xbf16, #tpu.memory_space<vmem>>, %arg9: memref<256x1xf32, #tpu.memory_space<vmem>>, %arg10: memref<14x256xbf16, #tpu.memory_space<vmem>>, %arg11: memref<14x1xf32, #tpu.memory_space<vmem>>, %arg12: memref<14x512xf32, #tpu.memory_space<vmem>>) attributes {dimension_semantics = [#tpu.dimension_semantics<parallel>], iteration_bounds = array<i64: 2>, scalar_prefetch = 0 : i64, scratch_operands = 0 : i64, tpu.core_type = #tpu.core_type<tc>, window_params = [{transform_indices = @transform_0, window_bounds = array<i64: 8, 512>}, {pipeline_mode = #tpu.pipeline_mode<synchronous>, transform_indices = @transform_1, window_bounds = array<i64: 64, 8>}, {pipeline_mode = #tpu.pipeline_mode<synchronous>, transform_indices = @transform_2, window_bounds = array<i64: 64, 1>}, {pipeline_mode = #tpu.pipeline_mode<synchronous>, transform_indices = @transform_3, window_bounds = array<i64: 128, 64>}, {pipeline_mode = #tpu.pipeline_mode<synchronous>, transform_indices = @transform_4, window_bounds = array<i64: 128, 1>}, {pipeline_mode = #tpu.pipeline_mode<synchronous>, transform_indices = @transform_5, window_bounds = array<i64: 256, 128>}, {pipeline_mode = #tpu.pipeline_mode<synchronous>, transform_indices = @transform_6, window_bounds = array<i64: 256, 1>}, {pipeline_mode = #tpu.pipeline_mode<synchronous>, transform_indices = @transform_7, window_bounds = array<i64: 256, 256>}, {pipeline_mode = #tpu.pipeline_mode<synchronous>, transform_indices = @transform_8, window_bounds = array<i64: 256, 1>}, {pipeline_mode = #tpu.pipeline_mode<synchronous>, transform_indices = @transform_9, window_bounds = array<i64: 14, 256>}, {pipeline_mode = #tpu.pipeline_mode<synchronous>, transform_indices = @transform_10, window_bounds = array<i64: 14, 1>}, {transform_indices = @transform_11, window_bounds = array<i64: 14, 512>}]} {
    %c0 = arith.constant 0 : index
    %c0_0 = arith.constant 0 : index
    %0 = vector.load %arg1[%c0, %c0_0] : memref<8x512xf32, #tpu.memory_space<vmem>>, vector<8x512xf32>
    %c0_1 = arith.constant 0 : index
    %c0_2 = arith.constant 0 : index
    %1 = vector.load %arg2[%c0_1, %c0_2] : memref<64x8xf32, #tpu.memory_space<vmem>>, vector<64x8xf32>
    %cst = arith.constant dense<0.000000e+00> : vector<64x512xf32>
    %2 = tpu.matmul %1, %0, %cst {dimension_numbers = #tpu.dot_dimension_numbers<[1], [0], [0], [1], [0, 0, 1, 1], [], []>} : vector<64x8xf32>, vector<8x512xf32>, vector<64x512xf32> -> vector<64x512xf32>
    %c0_3 = arith.constant 0 : index
    %c0_4 = arith.constant 0 : index
    %3 = vector.load %arg3[%c0_3, %c0_4] : memref<64x1xf32, #tpu.memory_space<vmem>>, vector<64x1xf32>
    %4 = vector.broadcast %3 : vector<64x1xf32> to vector<64x512xf32>
    %5 = arith.addf %2, %4 : vector<64x512xf32>
    %cst_5 = arith.constant 0.000000e+00 : f32
    %6 = vector.broadcast %cst_5 : f32 to vector<64x512xf32>
    %7 = arith.maximumf %5, %6 : vector<64x512xf32>
    %c0_6 = arith.constant 0 : index
    %c0_7 = arith.constant 0 : index
    %8 = vector.load %arg4[%c0_6, %c0_7] : memref<128x64xbf16, #tpu.memory_space<vmem>>, vector<128x64xbf16>
    %9 = arith.truncf %7 : vector<64x512xf32> to vector<64x512xbf16>
    %cst_8 = arith.constant dense<0.000000e+00> : vector<128x512xf32>
    %10 = tpu.matmul %8, %9, %cst_8 {dimension_numbers = #tpu.dot_dimension_numbers<[1], [0], [0], [1], [0, 0, 1, 1], [], []>} : vector<128x64xbf16>, vector<64x512xbf16>, vector<128x512xf32> -> vector<128x512xf32>
    %c0_9 = arith.constant 0 : index
    %c0_10 = arith.constant 0 : index
    %11 = vector.load %arg5[%c0_9, %c0_10] : memref<128x1xf32, #tpu.memory_space<vmem>>, vector<128x1xf32>
    %12 = vector.broadcast %11 : vector<128x1xf32> to vector<128x512xf32>
    %13 = arith.addf %10, %12 : vector<128x512xf32>
    %cst_11 = arith.constant 0.000000e+00 : f32
    %14 = vector.broadcast %cst_11 : f32 to vector<128x512xf32>
    %15 = arith.maximumf %13, %14 : vector<128x512xf32>
    %c0_12 = arith.constant 0 : index
    %c0_13 = arith.constant 0 : index
    %16 = vector.load %arg6[%c0_12, %c0_13] : memref<256x128xbf16, #tpu.memory_space<vmem>>, vector<256x128xbf16>
    %17 = arith.truncf %15 : vector<128x512xf32> to vector<128x512xbf16>
    %cst_14 = arith.constant dense<0.000000e+00> : vector<256x512xf32>
    %18 = tpu.matmul %16, %17, %cst_14 {dimension_numbers = #tpu.dot_dimension_numbers<[1], [0], [0], [1], [0, 0, 1, 1], [], []>} : vector<256x128xbf16>, vector<128x512xbf16>, vector<256x512xf32> -> vector<256x512xf32>
    %c0_15 = arith.constant 0 : index
    %c0_16 = arith.constant 0 : index
    %19 = vector.load %arg7[%c0_15, %c0_16] : memref<256x1xf32, #tpu.memory_space<vmem>>, vector<256x1xf32>
    %20 = vector.broadcast %19 : vector<256x1xf32> to vector<256x512xf32>
    %21 = arith.addf %18, %20 : vector<256x512xf32>
    %cst_17 = arith.constant 0.000000e+00 : f32
    %22 = vector.broadcast %cst_17 : f32 to vector<256x512xf32>
    %23 = arith.maximumf %21, %22 : vector<256x512xf32>
    %c0_18 = arith.constant 0 : index
    %c0_19 = arith.constant 0 : index
    %24 = vector.load %arg8[%c0_18, %c0_19] : memref<256x256xbf16, #tpu.memory_space<vmem>>, vector<256x256xbf16>
    %25 = arith.truncf %23 : vector<256x512xf32> to vector<256x512xbf16>
    %cst_20 = arith.constant dense<0.000000e+00> : vector<256x512xf32>
    %26 = tpu.matmul %24, %25, %cst_20 {dimension_numbers = #tpu.dot_dimension_numbers<[1], [0], [0], [1], [0, 0, 1, 1], [], []>} : vector<256x256xbf16>, vector<256x512xbf16>, vector<256x512xf32> -> vector<256x512xf32>
    %c0_21 = arith.constant 0 : index
    %c0_22 = arith.constant 0 : index
    %27 = vector.load %arg9[%c0_21, %c0_22] : memref<256x1xf32, #tpu.memory_space<vmem>>, vector<256x1xf32>
    %28 = vector.broadcast %27 : vector<256x1xf32> to vector<256x512xf32>
    %29 = arith.addf %26, %28 : vector<256x512xf32>
    %cst_23 = arith.constant 0.000000e+00 : f32
    %30 = vector.broadcast %cst_23 : f32 to vector<256x512xf32>
    %31 = arith.maximumf %29, %30 : vector<256x512xf32>
    %c0_24 = arith.constant 0 : index
    %c0_25 = arith.constant 0 : index
    %32 = vector.load %arg10[%c0_24, %c0_25] : memref<14x256xbf16, #tpu.memory_space<vmem>>, vector<14x256xbf16>
    %33 = arith.truncf %31 : vector<256x512xf32> to vector<256x512xbf16>
    %cst_26 = arith.constant dense<0.000000e+00> : vector<14x512xf32>
    %34 = tpu.matmul %32, %33, %cst_26 {dimension_numbers = #tpu.dot_dimension_numbers<[1], [0], [0], [1], [0, 0, 1, 1], [], []>} : vector<14x256xbf16>, vector<256x512xbf16>, vector<14x512xf32> -> vector<14x512xf32>
    %c0_27 = arith.constant 0 : index
    %c0_28 = arith.constant 0 : index
    %35 = vector.load %arg11[%c0_27, %c0_28] : memref<14x1xf32, #tpu.memory_space<vmem>>, vector<14x1xf32>
    %36 = vector.broadcast %35 : vector<14x1xf32> to vector<14x512xf32>
    %37 = arith.addf %34, %36 : vector<14x512xf32>
    %c0_29 = arith.constant 0 : index
    %c0_30 = arith.constant 0 : index
    %38 = vector.load %arg12[%c0_29, %c0_30] : memref<14x512xf32, #tpu.memory_space<vmem>>, vector<14x512xf32>
    tpu.vector_store %arg12[%c0_29, %c0_30], %37 {strides = array<i32>} : memref<14x512xf32, #tpu.memory_space<vmem>>, vector<14x512xf32>,
    return
  }
  func.func @transform_0(%arg0: i32) -> (i32, i32) {
    %c0_i32 = arith.constant 0 : i32
    %c0_i32_0 = arith.constant 0 : i32
    return %c0_i32, %arg0 : i32, i32
  }
  func.func @transform_1(%arg0: i32) -> (i32, i32) {
    %c0_i32 = arith.constant 0 : i32
    %c0_i32_0 = arith.constant 0 : i32
    %c0_i32_1 = arith.constant 0 : i32
    return %c0_i32, %c0_i32_0 : i32, i32
  }
  func.func @transform_2(%arg0: i32) -> (i32, i32) {
    %c0_i32 = arith.constant 0 : i32
    %c0_i32_0 = arith.constant 0 : i32
    %c0_i32_1 = arith.constant 0 : i32
    return %c0_i32, %c0_i32_0 : i32, i32
  }
  func.func @transform_3(%arg0: i32) -> (i32, i32) {
    %c0_i32 = arith.constant 0 : i32
    %c0_i32_0 = arith.constant 0 : i32
    %c0_i32_1 = arith.constant 0 : i32
    return %c0_i32, %c0_i32_0 : i32, i32
  }
  func.func @transform_4(%arg0: i32) -> (i32, i32) {
    %c0_i32 = arith.constant 0 : i32
    %c0_i32_0 = arith.constant 0 : i32
    %c0_i32_1 = arith.constant 0 : i32
    return %c0_i32, %c0_i32_0 : i32, i32
  }
  func.func @transform_5(%arg0: i32) -> (i32, i32) {
    %c0_i32 = arith.constant 0 : i32
    %c0_i32_0 = arith.constant 0 : i32
    %c0_i32_1 = arith.constant 0 : i32
    return %c0_i32, %c0_i32_0 : i32, i32
  }
  func.func @transform_6(%arg0: i32) -> (i32, i32) {
    %c0_i32 = arith.constant 0 : i32
    %c0_i32_0 = arith.constant 0 : i32
    %c0_i32_1 = arith.constant 0 : i32
    return %c0_i32, %c0_i32_0 : i32, i32
  }
  func.func @transform_7(%arg0: i32) -> (i32, i32) {
    %c0_i32 = arith.constant 0 : i32
    %c0_i32_0 = arith.constant 0 : i32
    %c0_i32_1 = arith.constant 0 : i32
    return %c0_i32, %c0_i32_0 : i32, i32
  }
  func.func @transform_8(%arg0: i32) -> (i32, i32) {
    %c0_i32 = arith.constant 0 : i32
    %c0_i32_0 = arith.constant 0 : i32
    %c0_i32_1 = arith.constant 0 : i32
    return %c0_i32, %c0_i32_0 : i32, i32
  }
  func.func @transform_9(%arg0: i32) -> (i32, i32) {
    %c0_i32 = arith.constant 0 : i32
    %c0_i32_0 = arith.constant 0 : i32
    %c0_i32_1 = arith.constant 0 : i32
    return %c0_i32, %c0_i32_0 : i32, i32
  }
  func.func @transform_10(%arg0: i32) -> (i32, i32) {
    %c0_i32 = arith.constant 0 : i32
    %c0_i32_0 = arith.constant 0 : i32
    %c0_i32_1 = arith.constant 0 : i32
    return %c0_i32, %c0_i32_0 : i32, i32
  }
  func.func @transform_11(%arg0: i32) -> (i32, i32) {
    %c0_i32 = arith.constant 0 : i32
    %c0_i32_0 = arith.constant 0 : i32
    return %c0_i32, %arg0 : i32, i32
  }
}

</mosaic_0001>

<llo_original>
// kernel: mlp_forward.1
$region0: #{mlp_forward.1}
  #allocation0 [shape = 'u32[]', space=smem, size = 0x4, offset = 0x4, fixed_abs, tag = 'smem constant byte address 0x4 - core index']
  #allocation1 [shape = 'u32[144,128]{1,0:T(1,128)}', space=vmem, size = 0x12000, scoped, tag = 'internal scratch']
  %s0 = inlined_call_operand.vmem [shape: f32[8,1000], index: 0, kind: input, shape index: {}]
  %s1 = inlined_call_operand.vmem [shape: f32[64,8], index: 1, kind: input, shape index: {}]
  %s2 = inlined_call_operand.vmem [shape: f32[64,1], index: 2, kind: input, shape index: {}]
  %s3 = inlined_call_operand.vmem [shape: bf16[128,64], index: 3, kind: input, shape index: {}]
  %s4 = inlined_call_operand.vmem [shape: f32[128,1], index: 4, kind: input, shape index: {}]
  %s5 = inlined_call_operand.vmem [shape: bf16[256,128], index: 5, kind: input, shape index: {}]
  %s6 = inlined_call_operand.vmem [shape: f32[256,1], index: 6, kind: input, shape index: {}]
  %s7 = inlined_call_operand.vmem [shape: bf16[256,256], index: 7, kind: input, shape index: {}]
  %s8 = inlined_call_operand.vmem [shape: f32[256,1], index: 8, kind: input, shape index: {}]
  %s9 = inlined_call_operand.vmem [shape: bf16[14,256], index: 9, kind: input, shape index: {}]
  %s10 = inlined_call_operand.vmem [shape: f32[14,1], index: 10, kind: input, shape index: {}]
  %s11 = inlined_call_operand.hbm [shape: f32[14,1000], index: 11, kind: output, shape index: {}]
  %s12 = sld [smem:[#allocation0]]
  $region77: #{mlp_forward.1} parent=0
    _
  %s14 = ssub.s32 1, %s12
  %s15 = scalar_select 0, %s14, %s12
  $region1: #{mlp_forward.1} parent=0
    #allocation2 [shape = 'u8[65536]{0}', space=vmem, size = 0x10000, scoped, tag = 'output window, operand 0']
    #allocation3 [shape = 's32[2]{0}', space=sflag, size = 0x8, scoped, tag = 'scoped memory for mlp_forward.1']
    %16 = vsyncpa [#allocation3], 0
    %s17 = scalar_lea.sflag [#allocation3], 1
    %18 = vsyncpa %s17, 0
    loop: start=0, step=1, limit=4
    $region2: #{mlp_forward.1} parent=1 // loop_pre_header
      _
    $region3: #{mlp_forward.1} parent=1 // loop_header
      %s20 = sphi 0, %s24
      %p21 = scmp.ge.s32.totalorder %s20, 4
      %s30 = sphi 0, %s32
      %s33 = sphi 0, %s30
      %s34 = sphi 0, %s33
      %s50 = sphi 0, %s34
      %s54 = sphi 0, %s54
      %s56 = sphi 0, %s54
      %s57 = sphi 0, %s56
      %s71 = sphi 0, %s57
      %s75 = sphi 0, %s75
      %s77 = sphi 0, %s75
      %s78 = sphi 0, %s77
      %s92 = sphi 0, %s78
      %s96 = sphi 0, %s96
      %s98 = sphi 0, %s96
      %s99 = sphi 0, %s98
      %s113 = sphi 0, %s99
      %s117 = sphi 0, %s117
      %s119 = sphi 0, %s117
      %s120 = sphi 0, %s119
      %s134 = sphi 0, %s120
      %s138 = sphi 0, %s138
      %s140 = sphi 0, %s138
      %s141 = sphi 0, %s140
      %s155 = sphi 0, %s141
      %s159 = sphi 0, %s159
      %s161 = sphi 0, %s159
      %s162 = sphi 0, %s161
      %s176 = sphi 0, %s162
      %s180 = sphi 0, %s180
      %s182 = sphi 0, %s180
      %s183 = sphi 0, %s182
      %s197 = sphi 0, %s183
      %s201 = sphi 0, %s201
      %s203 = sphi 0, %s201
      %s204 = sphi 0, %s203
      %s218 = sphi 0, %s204
      %s222 = sphi 0, %s222
      %s224 = sphi 0, %s222
      %s225 = sphi 0, %s224
      %s239 = sphi 0, %s225
      %s243 = sphi 0, %s243
      %s245 = sphi 0, %s243
      %s246 = sphi 0, %s245
      %s260 = sphi 0, %s246
      %s266 = sphi 0, %s268
      %s269 = sphi 0, %s266
      %s270 = sphi 0, %s269
      %s286 = sphi 0, %s270
    $region4: #{mlp_forward.1} parent=1 // loop_header_branch
      %23 = sbr.rel (%p21) target = $region8
    $region5: #{mlp_forward.1} parent=1 // loop_body
      %s25 = ssub.s32 %s20, 1
      %s26 = ssub.s32 %s20, 2
      %s27 = sadd.s32 %s20, 1
      %s28 = ssub.s32 %s20, %s27
      %p29 = scmp.eq.s32.totalorder %s28, 0
      %s31 = sadd.s32 %s30, 1
      %s32 = scalar_select %p29, %s30, %s31
      %p35 = pneg %p29
      %p36 = scmp.eq.s32.totalorder %s20, 1
      %p37 = por %p35, %p36
      %p38 = scmp.ne.s32.totalorder %s30, %s33
      %p39 = scmp.eq.s32.totalorder %s20, 0
      %p40 = por %p38, %p39
      %p41 = scmp.ne.s32.totalorder %s30, %s33
      %p42 = scmp.eq.s32.totalorder %s25, 1
      %p43 = por %p41, %p42
      %p44 = scmp.ne.s32.totalorder %s33, %s34
      %p45 = scmp.eq.s32.totalorder %s25, 0
      %p46 = por %p44, %p45
      %p47 = scmp.ne.s32.totalorder %s33, %s34
      %p48 = scmp.eq.s32.totalorder %s26, 1
      %p49 = por %p47, %p48
      %p51 = scmp.ne.s32.totalorder %s34, %s50
      %p52 = scmp.eq.s32.totalorder %s26, 0
      %p53 = por %p51, %p52
      %s55 = sadd.s32 %s54, 1
      %p58 = scmp.eq.s32.totalorder %s20, 1
      %p59 = scmp.ne.s32.totalorder %s54, %s56
      %p60 = scmp.eq.s32.totalorder %s20, 0
      %p61 = por %p59, %p60
      %p62 = scmp.ne.s32.totalorder %s54, %s56
      %p63 = scmp.eq.s32.totalorder %s25, 1
      %p64 = por %p62, %p63
      %p65 = scmp.ne.s32.totalorder %s56, %s57
      %p66 = scmp.eq.s32.totalorder %s25, 0
      %p67 = por %p65, %p66
      %p68 = scmp.ne.s32.totalorder %s56, %s57
      %p69 = scmp.eq.s32.totalorder %s26, 1
      %p70 = por %p68, %p69
      %p72 = scmp.ne.s32.totalorder %s57, %s71
      %p73 = scmp.eq.s32.totalorder %s26, 0
      %p74 = por %p72, %p73
      %s76 = sadd.s32 %s75, 1
      %p79 = scmp.eq.s32.totalorder %s20, 1
      %p80 = scmp.ne.s32.totalorder %s75, %s77
      %p81 = scmp.eq.s32.totalorder %s20, 0
      %p82 = por %p80, %p81
      %p83 = scmp.ne.s32.totalorder %s75, %s77
      %p84 = scmp.eq.s32.totalorder %s25, 1
      %p85 = por %p83, %p84
      %p86 = scmp.ne.s32.totalorder %s77, %s78
      %p87 = scmp.eq.s32.totalorder %s25, 0
      %p88 = por %p86, %p87
      %p89 = scmp.ne.s32.totalorder %s77, %s78
      %p90 = scmp.eq.s32.totalorder %s26, 1
      %p91 = por %p89, %p90
      %p93 = scmp.ne.s32.totalorder %s78, %s92
      %p94 = scmp.eq.s32.totalorder %s26, 0
      %p95 = por %p93, %p94
      %s97 = sadd.s32 %s96, 1
      %p100 = scmp.eq.s32.totalorder %s20, 1
      %p101 = scmp.ne.s32.totalorder %s96, %s98
      %p102 = scmp.eq.s32.totalorder %s20, 0
      %p103 = por %p101, %p102
      %p104 = scmp.ne.s32.totalorder %s96, %s98
      %p105 = scmp.eq.s32.totalorder %s25, 1
      %p106 = por %p104, %p105
      %p107 = scmp.ne.s32.totalorder %s98, %s99
      %p108 = scmp.eq.s32.totalorder %s25, 0
      %p109 = por %p107, %p108
      %p110 = scmp.ne.s32.totalorder %s98, %s99
      %p111 = scmp.eq.s32.totalorder %s26, 1
      %p112 = por %p110, %p111
      %p114 = scmp.ne.s32.totalorder %s99, %s113
      %p115 = scmp.eq.s32.totalorder %s26, 0
      %p116 = por %p114, %p115
      %s118 = sadd.s32 %s117, 1
      %p121 = scmp.eq.s32.totalorder %s20, 1
      %p122 = scmp.ne.s32.totalorder %s117, %s119
      %p123 = scmp.eq.s32.totalorder %s20, 0
      %p124 = por %p122, %p123
      %p125 = scmp.ne.s32.totalorder %s117, %s119
      %p126 = scmp.eq.s32.totalorder %s25, 1
      %p127 = por %p125, %p126
      %p128 = scmp.ne.s32.totalorder %s119, %s120
      %p129 = scmp.eq.s32.totalorder %s25, 0
      %p130 = por %p128, %p129
      %p131 = scmp.ne.s32.totalorder %s119, %s120
      %p132 = scmp.eq.s32.totalorder %s26, 1
      %p133 = por %p131, %p132
      %p135 = scmp.ne.s32.totalorder %s120, %s134
      %p136 = scmp.eq.s32.totalorder %s26, 0
      %p137 = por %p135, %p136
      %s139 = sadd.s32 %s138, 1
      %p142 = scmp.eq.s32.totalorder %s20, 1
      %p143 = scmp.ne.s32.totalorder %s138, %s140
      %p144 = scmp.eq.s32.totalorder %s20, 0
      %p145 = por %p143, %p144
      %p146 = scmp.ne.s32.totalorder %s138, %s140
      %p147 = scmp.eq.s32.totalorder %s25, 1
      %p148 = por %p146, %p147
      %p149 = scmp.ne.s32.totalorder %s140, %s141
      %p150 = scmp.eq.s32.totalorder %s25, 0
      %p151 = por %p149, %p150
      %p152 = scmp.ne.s32.totalorder %s140, %s141
      %p153 = scmp.eq.s32.totalorder %s26, 1
      %p154 = por %p152, %p153
      %p156 = scmp.ne.s32.totalorder %s141, %s155
      %p157 = scmp.eq.s32.totalorder %s26, 0
      %p158 = por %p156, %p157
      %s160 = sadd.s32 %s159, 1
      %p163 = scmp.eq.s32.totalorder %s20, 1
      %p164 = scmp.ne.s32.totalorder %s159, %s161
      %p165 = scmp.eq.s32.totalorder %s20, 0
      %p166 = por %p164, %p165
      %p167 = scmp.ne.s32.totalorder %s159, %s161
      %p168 = scmp.eq.s32.totalorder %s25, 1
      %p169 = por %p167, %p168
      %p170 = scmp.ne.s32.totalorder %s161, %s162
      %p171 = scmp.eq.s32.totalorder %s25, 0
      %p172 = por %p170, %p171
      %p173 = scmp.ne.s32.totalorder %s161, %s162
      %p174 = scmp.eq.s32.totalorder %s26, 1
      %p175 = por %p173, %p174
      %p177 = scmp.ne.s32.totalorder %s162, %s176
      %p178 = scmp.eq.s32.totalorder %s26, 0
      %p179 = por %p177, %p178
      %s181 = sadd.s32 %s180, 1
      %p184 = scmp.eq.s32.totalorder %s20, 1
      %p185 = scmp.ne.s32.totalorder %s180, %s182
      %p186 = scmp.eq.s32.totalorder %s20, 0
      %p187 = por %p185, %p186
      %p188 = scmp.ne.s32.totalorder %s180, %s182
      %p189 = scmp.eq.s32.totalorder %s25, 1
      %p190 = por %p188, %p189
      %p191 = scmp.ne.s32.totalorder %s182, %s183
      %p192 = scmp.eq.s32.totalorder %s25, 0
      %p193 = por %p191, %p192
      %p194 = scmp.ne.s32.totalorder %s182, %s183
      %p195 = scmp.eq.s32.totalorder %s26, 1
      %p196 = por %p194, %p195
      %p198 = scmp.ne.s32.totalorder %s183, %s197
      %p199 = scmp.eq.s32.totalorder %s26, 0
      %p200 = por %p198, %p199
      %s202 = sadd.s32 %s201, 1
      %p205 = scmp.eq.s32.totalorder %s20, 1
      %p206 = scmp.ne.s32.totalorder %s201, %s203
      %p207 = scmp.eq.s32.totalorder %s20, 0
      %p208 = por %p206, %p207
      %p209 = scmp.ne.s32.totalorder %s201, %s203
      %p210 = scmp.eq.s32.totalorder %s25, 1
      %p211 = por %p209, %p210
      %p212 = scmp.ne.s32.totalorder %s203, %s204
      %p213 = scmp.eq.s32.totalorder %s25, 0
      %p214 = por %p212, %p213
      %p215 = scmp.ne.s32.totalorder %s203, %s204
      %p216 = scmp.eq.s32.totalorder %s26, 1
      %p217 = por %p215, %p216
      %p219 = scmp.ne.s32.totalorder %s204, %s218
      %p220 = scmp.eq.s32.totalorder %s26, 0
      %p221 = por %p219, %p220
      %s223 = sadd.s32 %s222, 1
      %p226 = scmp.eq.s32.totalorder %s20, 1
      %p227 = scmp.ne.s32.totalorder %s222, %s224
      %p228 = scmp.eq.s32.totalorder %s20, 0
      %p229 = por %p227, %p228
      %p230 = scmp.ne.s32.totalorder %s222, %s224
      %p231 = scmp.eq.s32.totalorder %s25, 1
      %p232 = por %p230, %p231
      %p233 = scmp.ne.s32.totalorder %s224, %s225
      %p234 = scmp.eq.s32.totalorder %s25, 0
      %p235 = por %p233, %p234
      %p236 = scmp.ne.s32.totalorder %s224, %s225
      %p237 = scmp.eq.s32.totalorder %s26, 1
      %p238 = por %p236, %p237
      %p240 = scmp.ne.s32.totalorder %s225, %s239
      %p241 = scmp.eq.s32.totalorder %s26, 0
      %p242 = por %p240, %p241
      %s244 = sadd.s32 %s243, 1
      %p247 = scmp.eq.s32.totalorder %s20, 1
      %p248 = scmp.ne.s32.totalorder %s243, %s245
      %p249 = scmp.eq.s32.totalorder %s20, 0
      %p250 = por %p248, %p249
      %p251 = scmp.ne.s32.totalorder %s243, %s245
      %p252 = scmp.eq.s32.totalorder %s25, 1
      %p253 = por %p251, %p252
      %p254 = scmp.ne.s32.totalorder %s245, %s246
      %p255 = scmp.eq.s32.totalorder %s25, 0
      %p256 = por %p254, %p255
      %p257 = scmp.ne.s32.totalorder %s245, %s246
      %p258 = scmp.eq.s32.totalorder %s26, 1
      %p259 = por %p257, %p258
      %p261 = scmp.ne.s32.totalorder %s246, %s260
      %p262 = scmp.eq.s32.totalorder %s26, 0
      %p263 = por %p261, %p262
      %s264 = ssub.s32 %s20, %s27
      %p265 = scmp.eq.s32.totalorder %s264, 0
      %s267 = sadd.s32 %s266, 1
      %s268 = scalar_select %p265, %s266, %s267
      %p271 = pneg %p265
      %p272 = scmp.eq.s32.totalorder %s20, 1
      %p273 = por %p271, %p272
      %p274 = scmp.ne.s32.totalorder %s266, %s269
      %p275 = scmp.eq.s32.totalorder %s20, 0
      %p276 = por %p274, %p275
      %p277 = scmp.ne.s32.totalorder %s266, %s269
      %p278 = scmp.eq.s32.totalorder %s25, 1
      %p279 = por %p277, %p278
      %p280 = scmp.ne.s32.totalorder %s269, %s270
      %p281 = scmp.eq.s32.totalorder %s25, 0
      %p282 = por %p280, %p281
      %p283 = scmp.ne.s32.totalorder %s269, %s270
      %p284 = scmp.eq.s32.totalorder %s26, 1
      %p285 = por %p283, %p284
      %p287 = scmp.ne.s32.totalorder %s270, %s286
      %p288 = scmp.eq.s32.totalorder %s26, 0
      %p289 = por %p287, %p288
      %p290 = scmp.le.s32.totalorder 1, %s20
      %p291 = scmp.lt.s32.totalorder %s20, 3
      %p292 = pnand %p290, %p291
      %p293 = pneg %p292
      // Predicated region
      $region9: #{mlp_forward.1} parent=5 // pred_check
        _
      $region10: #{mlp_forward.1} parent=5 // pred_check_branch
        %295 = sbr.rel (%p292) target = $region12
      $region11: #{mlp_forward.1} parent=5 // pred_region
        %s296 = ssub.s32 %s20, 1
        // Predicated region
        $region13: #{mlp_forward.1} parent=11 // pred_check
          %p297 = pneg %p67
        $region14: #{mlp_forward.1} parent=11 // pred_check_branch
          %299 = sbr.rel (%p297) target = $region16
        $region15: #{mlp_forward.1} parent=11 // pred_region
          _
        $region16: #{mlp_forward.1} parent=11 // pred_fallthru
          _
        // Predicated region
        $region17: #{mlp_forward.1} parent=11 // pred_check
          %p300 = pneg %p88
        $region18: #{mlp_forward.1} parent=11 // pred_check_branch
          %302 = sbr.rel (%p300) target = $region20
        $region19: #{mlp_forward.1} parent=11 // pred_region
          _
        $region20: #{mlp_forward.1} parent=11 // pred_fallthru
          _
        // Predicated region
        $region21: #{mlp_forward.1} parent=11 // pred_check
          %p303 = pneg %p109
        $region22: #{mlp_forward.1} parent=11 // pred_check_branch
          %305 = sbr.rel (%p303) target = $region24
        $region23: #{mlp_forward.1} parent=11 // pred_region
          _
        $region24: #{mlp_forward.1} parent=11 // pred_fallthru
          _
        // Predicated region
        $region25: #{mlp_forward.1} parent=11 // pred_check
          %p306 = pneg %p130
        $region26: #{mlp_forward.1} parent=11 // pred_check_branch
          %308 = sbr.rel (%p306) target = $region28
        $region27: #{mlp_forward.1} parent=11 // pred_region
          _
        $region28: #{mlp_forward.1} parent=11 // pred_fallthru
          _
        // Predicated region
        $region29: #{mlp_forward.1} parent=11 // pred_check
          %p309 = pneg %p151
        $region30: #{mlp_forward.1} parent=11 // pred_check_branch
          %311 = sbr.rel (%p309) target = $region32
        $region31: #{mlp_forward.1} parent=11 // pred_region
          _
        $region32: #{mlp_forward.1} parent=11 // pred_fallthru
          _
        // Predicated region
        $region33: #{mlp_forward.1} parent=11 // pred_check
          %p312 = pneg %p172
        $region34: #{mlp_forward.1} parent=11 // pred_check_branch
          %314 = sbr.rel (%p312) target = $region36
        $region35: #{mlp_forward.1} parent=11 // pred_region
          _
        $region36: #{mlp_forward.1} parent=11 // pred_fallthru
          _
        // Predicated region
        $region37: #{mlp_forward.1} parent=11 // pred_check
          %p315 = pneg %p193
        $region38: #{mlp_forward.1} parent=11 // pred_check_branch
          %317 = sbr.rel (%p315) target = $region40
        $region39: #{mlp_forward.1} parent=11 // pred_region
          _
        $region40: #{mlp_forward.1} parent=11 // pred_fallthru
          _
        // Predicated region
        $region41: #{mlp_forward.1} parent=11 // pred_check
          %p318 = pneg %p214
        $region42: #{mlp_forward.1} parent=11 // pred_check_branch
          %320 = sbr.rel (%p318) target = $region44
        $region43: #{mlp_forward.1} parent=11 // pred_region
          _
        $region44: #{mlp_forward.1} parent=11 // pred_fallthru
          _
        // Predicated region
        $region45: #{mlp_forward.1} parent=11 // pred_check
          %p321 = pneg %p235
        $region46: #{mlp_forward.1} parent=11 // pred_check_branch
          %323 = sbr.rel (%p321) target = $region48
        $region47: #{mlp_forward.1} parent=11 // pred_region
          _
        $region48: #{mlp_forward.1} parent=11 // pred_fallthru
          _
        // Predicated region
        $region49: #{mlp_forward.1} parent=11 // pred_check
          %p324 = pneg %p256
        $region50: #{mlp_forward.1} parent=11 // pred_check_branch
          %326 = sbr.rel (%p324) target = $region52
        $region51: #{mlp_forward.1} parent=11 // pred_region
          _
        $region52: #{mlp_forward.1} parent=11 // pred_fallthru
          _
      $region12: #{mlp_forward.1} parent=5 // pred_fallthru
        _
      %p327 = scmp.lt.s32.totalorder %s20, 2
      // Predicated region
      $region53: #{mlp_forward.1} parent=5 // pred_check
        %p328 = pneg %p327
      $region54: #{mlp_forward.1} parent=5 // pred_check_branch
        %330 = sbr.rel (%p328) target = $region56
      $region55: #{mlp_forward.1} parent=5 // pred_region
        // Predicated region
        $region57: #{mlp_forward.1} parent=55 // pred_check
          %p331 = pneg %p40
        $region58: #{mlp_forward.1} parent=55 // pred_check_branch
          %333 = sbr.rel (%p331) target = $region60
        $region59: #{mlp_forward.1} parent=55 // pred_region
          %s334 = smul.u32 4, %s20
          %p335 = scmp.lt.s32.totalorder %s334, 7
          %s336 = scalar_select %p335, %s334, 7
          %s337 = smul.addr %s336, 8
          %s338 = scalar_lea.vmem %s0, %s337
          %s339 = smul.u32 4, %s20
        $region60: #{mlp_forward.1} parent=55 // pred_fallthru
          _
      $region56: #{mlp_forward.1} parent=5 // pred_fallthru
        _
      %p340 = scmp.le.s32.totalorder 1, %s20
      %p341 = scmp.lt.s32.totalorder %s20, 3
      %p342 = pnand %p340, %p341
      %p343 = pneg %p342
      // Predicated region
      $region61: #{mlp_forward.1} parent=5 // pred_check
        _
      $region62: #{mlp_forward.1} parent=5 // pred_check_branch
        %345 = sbr.rel (%p342) target = $region64
      $region63: #{mlp_forward.1} parent=5 // pred_region
        %s346 = ssub.s32 %s20, 1
        %s347 = smul.u32 4, %s25
        %p348 = scmp.lt.s32.totalorder %s347, 7
        %s349 = scalar_select %p348, %s347, 7
        %s350 = smul.addr %s349, 8
        %s351 = scalar_lea.vmem %s0, %s350
        %p352 = pneg %p46
        %p353 = pneg %p43
        %p354 = pneg %p67
        %p355 = pneg %p64
        %p356 = pneg %p88
        %p357 = pneg %p85
        %p358 = pneg %p109
        %p359 = pneg %p106
        %p360 = pneg %p130
        %p361 = pneg %p127
        %p362 = pneg %p151
        %p363 = pneg %p148
        %p364 = pneg %p172
        %p365 = pneg %p169
        %p366 = pneg %p193
        %p367 = pneg %p190
        %p368 = pneg %p214
        %p369 = pneg %p211
        %p370 = pneg %p235
        %p371 = pneg %p232
        %p372 = pneg %p256
        %p373 = pneg %p253
        %p374 = pneg %p282
        %p375 = pneg %p279
        %s376 = sand.u32 %s269, 1
        %s377 = scalar_lea.sflag [#allocation3], %s376
        %s378 = sand.u32 %s269, 1
        %s379 = smul.addr %s378, 64
        %s380 = scalar_lea.vmem [#allocation2], %s379
        %s381 = smul.u32 4, %s25
        %p382 = scmp.lt.s32.totalorder %s381, 7
        %s383 = scalar_select %p382, %s381, 7
        %s384 = smul.addr %s383, 8
        %s385 = scalar_lea.vmem %s0, %s384
        %s386 = smul.u32 4, %s25
        %s387 = smul.u32 4, %s25
        %v389 = vld [vmem:[%s385] sm:$0xff]
        %v390 = vld [vmem:[%s385 + $0x8] sm:$0xff]
        %v391 = vld [vmem:[%s385 + $0x10] sm:$0xff]
        %v392 = vld [vmem:[%s385 + $0x18] sm:$0xff]
        %v393 = vld [vmem:[%s1] sm:$0xff]
        %v394 = vld [vmem:[%s1 + $0x8] sm:$0xff]
        %v395 = vld [vmem:[%s1 + $0x10] sm:$0xff]
        %v396 = vld [vmem:[%s1 + $0x18] sm:$0xff]
        %v397 = vld [vmem:[%s1 + $0x20] sm:$0xff]
        %v398 = vld [vmem:[%s1 + $0x28] sm:$0xff]
        %v399 = vld [vmem:[%s1 + $0x30] sm:$0xff]
        %v400 = vld [vmem:[%s1 + $0x38] sm:$0xff]
        %v401 = vld [vmem:[%s2] sm:$0xff]
        %v402 = vld [vmem:[%s2 + $0x8] sm:$0xff]
        %v403 = vld [vmem:[%s2 + $0x10] sm:$0xff]
        %v404 = vld [vmem:[%s2 + $0x18] sm:$0xff]
        %v405 = vld [vmem:[%s2 + $0x20] sm:$0xff]
        %v406 = vld [vmem:[%s2 + $0x28] sm:$0xff]
        %v407 = vld [vmem:[%s2 + $0x30] sm:$0xff]
        %v408 = vld [vmem:[%s2 + $0x38] sm:$0xff]
        %410 = vset.pattern.permute.xlu0 0
        %411 = vperm.xlu0 %410, %v401
        %v412 = vpop.permute.xlu0 %411
        %415 = vset.pattern.permute.xlu0 0
        %416 = vperm.xlu0 %415, %v402
        %v417 = vpop.permute.xlu0 %416
        %420 = vset.pattern.permute.xlu0 0
        %421 = vperm.xlu0 %420, %v403
        %v422 = vpop.permute.xlu0 %421
        %425 = vset.pattern.permute.xlu0 0
        %426 = vperm.xlu0 %425, %v404
        %v427 = vpop.permute.xlu0 %426
        %430 = vset.pattern.permute.xlu0 0
        %431 = vperm.xlu0 %430, %v405
        %v432 = vpop.permute.xlu0 %431
        %435 = vset.pattern.permute.xlu0 0
        %436 = vperm.xlu0 %435, %v406
        %v437 = vpop.permute.xlu0 %436
        %440 = vset.pattern.permute.xlu0 0
        %441 = vperm.xlu0 %440, %v407
        %v442 = vpop.permute.xlu0 %441
        %445 = vset.pattern.permute.xlu0 0
        %446 = vperm.xlu0 %445, %v408
        %v447 = vpop.permute.xlu0 %446
        %vm449 = vcmask 64512
        %v451 = vsel %vm449, %v393, 0
        %v454 = vsel %vm449, %v394, 0
        %v457 = vsel %vm449, %v395, 0
        %v460 = vsel %vm449, %v396, 0
        %v463 = vsel %vm449, %v397, 0
        %v466 = vsel %vm449, %v398, 0
        %v469 = vsel %vm449, %v399, 0
        %v472 = vsel %vm449, %v400, 0
        %474 = vmatprep.subr.mxu0 0.0
        %475 = vmatpush1.msra.mxu0 0.0
        %476 = vmatprep.subr.mxu0 0.0
        %477 = vmatpush1.msra.mxu0 0.0
        %478 = vmatprep.subr.mxu0 0.0
        %479 = vmatpush1.msra.mxu0 0.0
        %480 = vmatprep.subr.mxu0 0.0
        %481 = vmatpush1.msra.mxu0 0.0
        %482 = vmatprep.subr.mxu0 0.0
        %483 = vmatpush1.msra.mxu0 0.0
        %484 = vmatprep.subr.mxu0 0.0
        %485 = vmatpush1.msra.mxu0 0.0
        %486 = vmatprep.subr.mxu0 0.0
        %487 = vmatpush1.msra.mxu0 0.0
        %488 = vmatprep.subr.mxu0 0.0
        %489 = vmatpush1.msra.mxu0 0.0
        %490 = vmatprep.subr.mxu0 0.0
        %491 = vmatpush1.msra.mxu0 0.0
        %492 = vmatprep.subr.mxu0 0.0
        %493 = vmatpush1.msra.mxu0 0.0
        %494 = vmatprep.subr.mxu0 0.0
        %495 = vmatpush1.msra.mxu0 0.0
        %496 = vmatprep.subr.mxu0 0.0
        %497 = vmatpush1.msra.mxu0 0.0
        %498 = vmatprep.subr.mxu0 0.0
        %499 = vmatpush1.msra.mxu0 0.0
        %500 = vmatprep.subr.mxu0 0.0
        %501 = vmatpush1.msra.mxu0 0.0
        %502 = vmatprep.subr.mxu0 0.0
        %503 = vmatpush1.msra.mxu0 0.0
        %504 = vmatprep.subr.mxu0 %v390
        %505 = vmatpush1.msra.mxu0 %v389
        %506 = vmatprep.subr.mxu0 0.0
        %507 = vmatpush2.msra.mxu0 0.0
        %508 = vmatprep.subr.mxu0 0.0
        %509 = vmatpush2.msra.mxu0 0.0
        %510 = vmatprep.subr.mxu0 0.0
        %511 = vmatpush2.msra.mxu0 0.0
        %512 = vmatprep.subr.mxu0 0.0
        %513 = vmatpush2.msra.mxu0 0.0
        %514 = vmatprep.subr.mxu0 0.0
        %515 = vmatpush2.msra.mxu0 0.0
        %516 = vmatprep.subr.mxu0 0.0
        %517 = vmatpush2.msra.mxu0 0.0
        %518 = vmatprep.subr.mxu0 0.0
        %519 = vmatpush2.msra.mxu0 0.0
        %520 = vmatprep.subr.mxu0 0.0
        %521 = vmatpush2.msra.mxu0 0.0
        %522 = vmatprep.subr.mxu0 0.0
        %523 = vmatpush2.msra.mxu0 0.0
        %524 = vmatprep.subr.mxu0 0.0
        %525 = vmatpush2.msra.mxu0 0.0
        %526 = vmatprep.subr.mxu0 0.0
        %527 = vmatpush2.msra.mxu0 0.0
        %528 = vmatprep.subr.mxu0 0.0
        %529 = vmatpush2.msra.mxu0 0.0
        %530 = vmatprep.subr.mxu0 0.0
        %531 = vmatpush2.msra.mxu0 0.0
        %532 = vmatprep.subr.mxu0 0.0
        %533 = vmatpush2.msra.mxu0 0.0
        %534 = vmatprep.subr.mxu0 0.0
        %535 = vmatpush2.msra.mxu0 0.0
        %536 = vmatprep.subr.mxu0 0.0
        %537 = vmatpush2.msra.mxu0 0.0
        %538 = vmatprep.mubr.f32.mxu0 0.0
        %539 = vmatmul.mubr.f32.gmra.mxu0 %v451
        %v540 = vpop.f32.mrf.mxu0
        %v541 = vadd.f32 %v412, %v540
        %v542 = vpop.f32.mrf.mxu0
        %v543 = vadd.f32 %v412, %v542
        %544 = vmatprep.mubr.f32.mxu0 0.0
        %545 = vmatmul.mubr.f32.gmra.mxu0 %v454
        %v546 = vpop.f32.mrf.mxu0
        %v547 = vadd.f32 %v417, %v546
        %v548 = vpop.f32.mrf.mxu0
        %v549 = vadd.f32 %v417, %v548
        %550 = vmatprep.mubr.f32.mxu0 0.0
        %551 = vmatmul.mubr.f32.gmra.mxu0 %v457
        %v552 = vpop.f32.mrf.mxu0
        %v553 = vadd.f32 %v422, %v552
        %v554 = vpop.f32.mrf.mxu0
        %v555 = vadd.f32 %v422, %v554
        %556 = vmatprep.mubr.f32.mxu0 0.0
        %557 = vmatmul.mubr.f32.gmra.mxu0 %v460
        %v558 = vpop.f32.mrf.mxu0
        %v559 = vadd.f32 %v427, %v558
        %v560 = vpop.f32.mrf.mxu0
        %v561 = vadd.f32 %v427, %v560
        %562 = vmatprep.mubr.f32.mxu0 0.0
        %563 = vmatmul.mubr.f32.gmra.mxu0 %v463
        %v564 = vpop.f32.mrf.mxu0
        %v565 = vadd.f32 %v432, %v564
        %v566 = vpop.f32.mrf.mxu0
        %v567 = vadd.f32 %v432, %v566
        %568 = vmatprep.mubr.f32.mxu0 0.0
        %569 = vmatmul.mubr.f32.gmra.mxu0 %v466
        %v570 = vpop.f32.mrf.mxu0
        %v571 = vadd.f32 %v437, %v570
        %v572 = vpop.f32.mrf.mxu0
        %v573 = vadd.f32 %v437, %v572
        %574 = vmatprep.mubr.f32.mxu0 0.0
        %575 = vmatmul.mubr.f32.gmra.mxu0 %v469
        %v576 = vpop.f32.mrf.mxu0
        %v577 = vadd.f32 %v442, %v576
        %v578 = vpop.f32.mrf.mxu0
        %v579 = vadd.f32 %v442, %v578
        %580 = vmatprep.mubr.f32.mxu0 0.0
        %581 = vmatmul.mubr.f32.gmra.mxu0 %v472
        %v582 = vpop.f32.mrf.mxu0
        %v583 = vadd.f32 %v447, %v582
        %v584 = vpop.f32.mrf.mxu0
        %v585 = vadd.f32 %v447, %v584
        %586 = vdwg.mxu0
        %587 = vmatprep.subr.mxu0 0.0
        %588 = vmatpush1.msra.mxu0 0.0
        %589 = vmatprep.subr.mxu0 0.0
        %590 = vmatpush1.msra.mxu0 0.0
        %591 = vmatprep.subr.mxu0 0.0
        %592 = vmatpush1.msra.mxu0 0.0
        %593 = vmatprep.subr.mxu0 0.0
        %594 = vmatpush1.msra.mxu0 0.0
        %595 = vmatprep.subr.mxu0 0.0
        %596 = vmatpush1.msra.mxu0 0.0
        %597 = vmatprep.subr.mxu0 0.0
        %598 = vmatpush1.msra.mxu0 0.0
        %599 = vmatprep.subr.mxu0 0.0
        %600 = vmatpush1.msra.mxu0 0.0
        %601 = vmatprep.subr.mxu0 0.0
        %602 = vmatpush1.msra.mxu0 0.0
        %603 = vmatprep.subr.mxu0 0.0
        %604 = vmatpush1.msra.mxu0 0.0
        %605 = vmatprep.subr.mxu0 0.0
        %606 = vmatpush1.msra.mxu0 0.0
        %607 = vmatprep.subr.mxu0 0.0
        %608 = vmatpush1.msra.mxu0 0.0
        %609 = vmatprep.subr.mxu0 0.0
        %610 = vmatpush1.msra.mxu0 0.0
        %611 = vmatprep.subr.mxu0 0.0
        %612 = vmatpush1.msra.mxu0 0.0
        %613 = vmatprep.subr.mxu0 0.0
        %614 = vmatpush1.msra.mxu0 0.0
        %615 = vmatprep.subr.mxu0 0.0
        %616 = vmatpush1.msra.mxu0 0.0
        %617 = vmatprep.subr.mxu0 %v392
        %618 = vmatpush1.msra.mxu0 %v391
        %619 = vmatprep.subr.mxu0 0.0
        %620 = vmatpush2.msra.mxu0 0.0
        %621 = vmatprep.subr.mxu0 0.0
        %622 = vmatpush2.msra.mxu0 0.0
        %623 = vmatprep.subr.mxu0 0.0
        %624 = vmatpush2.msra.mxu0 0.0
        %625 = vmatprep.subr.mxu0 0.0
        %626 = vmatpush2.msra.mxu0 0.0
        %627 = vmatprep.subr.mxu0 0.0
        %628 = vmatpush2.msra.mxu0 0.0
        %629 = vmatprep.subr.mxu0 0.0
        %630 = vmatpush2.msra.mxu0 0.0
        %631 = vmatprep.subr.mxu0 0.0
        %632 = vmatpush2.msra.mxu0 0.0
        %633 = vmatprep.subr.mxu0 0.0
        %634 = vmatpush2.msra.mxu0 0.0
        %635 = vmatprep.subr.mxu0 0.0
        %636 = vmatpush2.msra.mxu0 0.0
        %637 = vmatprep.subr.mxu0 0.0
        %638 = vmatpush2.msra.mxu0 0.0
        %639 = vmatprep.subr.mxu0 0.0
        %640 = vmatpush2.msra.mxu0 0.0
        %641 = vmatprep.subr.mxu0 0.0
        %642 = vmatpush2.msra.mxu0 0.0
        %643 = vmatprep.subr.mxu0 0.0
        %644 = vmatpush2.msra.mxu0 0.0
        %645 = vmatprep.subr.mxu0 0.0
        %646 = vmatpush2.msra.mxu0 0.0
        %647 = vmatprep.subr.mxu0 0.0
        %648 = vmatpush2.msra.mxu0 0.0
        %649 = vmatprep.subr.mxu0 0.0
        %650 = vmatpush2.msra.mxu0 0.0
        %651 = vmatprep.mubr.f32.mxu0 0.0
        %652 = vmatmul.mubr.f32.gmra.mxu0 %v451
        %v653 = vpop.f32.mrf.mxu0
        %v654 = vadd.f32 %v412, %v653
        %v655 = vpop.f32.mrf.mxu0
        %v656 = vadd.f32 %v412, %v655
        %657 = vmatprep.mubr.f32.mxu0 0.0
        %658 = vmatmul.mubr.f32.gmra.mxu0 %v454
        %v659 = vpop.f32.mrf.mxu0
        %v660 = vadd.f32 %v417, %v659
        %v661 = vpop.f32.mrf.mxu0
        %v662 = vadd.f32 %v417, %v661
        %663 = vmatprep.mubr.f32.mxu0 0.0
        %664 = vmatmul.mubr.f32.gmra.mxu0 %v457
        %v665 = vpop.f32.mrf.mxu0
        %v666 = vadd.f32 %v422, %v665
        %v667 = vpop.f32.mrf.mxu0
        %v668 = vadd.f32 %v422, %v667
        %669 = vmatprep.mubr.f32.mxu0 0.0
        %670 = vmatmul.mubr.f32.gmra.mxu0 %v460
        %v671 = vpop.f32.mrf.mxu0
        %v672 = vadd.f32 %v427, %v671
        %v673 = vpop.f32.mrf.mxu0
        %v674 = vadd.f32 %v427, %v673
        %675 = vmatprep.mubr.f32.mxu0 0.0
        %676 = vmatmul.mubr.f32.gmra.mxu0 %v463
        %v677 = vpop.f32.mrf.mxu0
        %v678 = vadd.f32 %v432, %v677
        %v679 = vpop.f32.mrf.mxu0
        %v680 = vadd.f32 %v432, %v679
        %681 = vmatprep.mubr.f32.mxu0 0.0
        %682 = vmatmul.mubr.f32.gmra.mxu0 %v466
        %v683 = vpop.f32.mrf.mxu0
        %v684 = vadd.f32 %v437, %v683
        %v685 = vpop.f32.mrf.mxu0
        %v686 = vadd.f32 %v437, %v685
        %687 = vmatprep.mubr.f32.mxu0 0.0
        %688 = vmatmul.mubr.f32.gmra.mxu0 %v469
        %v689 = vpop.f32.mrf.mxu0
        %v690 = vadd.f32 %v442, %v689
        %v691 = vpop.f32.mrf.mxu0
        %v692 = vadd.f32 %v442, %v691
        %693 = vmatprep.mubr.f32.mxu0 0.0
        %694 = vmatmul.mubr.f32.gmra.mxu0 %v472
        %v695 = vpop.f32.mrf.mxu0
        %v696 = vadd.f32 %v447, %v695
        %v697 = vpop.f32.mrf.mxu0
        %v698 = vadd.f32 %v447, %v697
        %699 = vdwg.mxu0
        %v700 = vmax.f32 %v541, 0.0
        %v701 = vmax.f32 %v543, 0.0
        %v702 = vmax.f32 %v654, 0.0
        %v703 = vmax.f32 %v656, 0.0
        %v704 = vmax.f32 %v547, 0.0
        %v705 = vmax.f32 %v549, 0.0
        %v706 = vmax.f32 %v660, 0.0
        %v707 = vmax.f32 %v662, 0.0
        %v708 = vmax.f32 %v553, 0.0
        %v709 = vmax.f32 %v555, 0.0
        %v710 = vmax.f32 %v666, 0.0
        %v711 = vmax.f32 %v668, 0.0
        %v712 = vmax.f32 %v559, 0.0
        %v713 = vmax.f32 %v561, 0.0
        %v714 = vmax.f32 %v672, 0.0
        %v715 = vmax.f32 %v674, 0.0
        %v716 = vmax.f32 %v565, 0.0
        %v717 = vmax.f32 %v567, 0.0
        %v718 = vmax.f32 %v678, 0.0
        %v719 = vmax.f32 %v680, 0.0
        %v720 = vmax.f32 %v571, 0.0
        %v721 = vmax.f32 %v573, 0.0
        %v722 = vmax.f32 %v684, 0.0
        %v723 = vmax.f32 %v686, 0.0
        %v724 = vmax.f32 %v577, 0.0
        %v725 = vmax.f32 %v579, 0.0
        %v726 = vmax.f32 %v690, 0.0
        %v727 = vmax.f32 %v692, 0.0
        %v728 = vmax.f32 %v583, 0.0
        %v729 = vmax.f32 %v585, 0.0
        %v730 = vmax.f32 %v696, 0.0
        %v731 = vmax.f32 %v698, 0.0
        %v732 = vld [vmem:[%s3] sm:$0xf]
        %v733 = vld [vmem:[%s3 + $0x4] sm:$0xf]
        %v734 = vld [vmem:[%s3 + $0x8] sm:$0xf]
        %v735 = vld [vmem:[%s3 + $0xc] sm:$0xf]
        %v736 = vld [vmem:[%s3 + $0x10] sm:$0xf]
        %v737 = vld [vmem:[%s3 + $0x14] sm:$0xf]
        %v738 = vld [vmem:[%s3 + $0x18] sm:$0xf]
        %v739 = vld [vmem:[%s3 + $0x1c] sm:$0xf]
        %v740 = vld [vmem:[%s3 + $0x20] sm:$0xf]
        %v741 = vld [vmem:[%s3 + $0x24] sm:$0xf]
        %v742 = vld [vmem:[%s3 + $0x28] sm:$0xf]
        %v743 = vld [vmem:[%s3 + $0x2c] sm:$0xf]
        %v744 = vld [vmem:[%s3 + $0x30] sm:$0xf]
        %v745 = vld [vmem:[%s3 + $0x34] sm:$0xf]
        %v746 = vld [vmem:[%s3 + $0x38] sm:$0xf]
        %v747 = vld [vmem:[%s3 + $0x3c] sm:$0xf]
        %v748 = vpack.c.bf16 %v704, %v700
        %v749 = vpack.c.bf16 %v705, %v701
        %v750 = vpack.c.bf16 %v706, %v702
        %v751 = vpack.c.bf16 %v707, %v703
        %v752 = vpack.c.bf16 %v712, %v708
        %v753 = vpack.c.bf16 %v713, %v709
        %v754 = vpack.c.bf16 %v714, %v710
        %v755 = vpack.c.bf16 %v715, %v711
        %v756 = vpack.c.bf16 %v720, %v716
        %v757 = vpack.c.bf16 %v721, %v717
        %v758 = vpack.c.bf16 %v722, %v718
        %v759 = vpack.c.bf16 %v723, %v719
        %v760 = vpack.c.bf16 %v728, %v724
        %v761 = vpack.c.bf16 %v729, %v725
        %v762 = vpack.c.bf16 %v730, %v726
        %v763 = vpack.c.bf16 %v731, %v727
        %v764 = vld [vmem:[%s4] sm:$0xff]
        %v765 = vld [vmem:[%s4 + $0x8] sm:$0xff]
        %v766 = vld [vmem:[%s4 + $0x10] sm:$0xff]
        %v767 = vld [vmem:[%s4 + $0x18] sm:$0xff]
        %v768 = vld [vmem:[%s4 + $0x20] sm:$0xff]
        %v769 = vld [vmem:[%s4 + $0x28] sm:$0xff]
        %v770 = vld [vmem:[%s4 + $0x30] sm:$0xff]
        %v771 = vld [vmem:[%s4 + $0x38] sm:$0xff]
        %v772 = vld [vmem:[%s4 + $0x40] sm:$0xff]
        %v773 = vld [vmem:[%s4 + $0x48] sm:$0xff]
        %v774 = vld [vmem:[%s4 + $0x50] sm:$0xff]
        %v775 = vld [vmem:[%s4 + $0x58] sm:$0xff]
        %v776 = vld [vmem:[%s4 + $0x60] sm:$0xff]
        %v777 = vld [vmem:[%s4 + $0x68] sm:$0xff]
        %v778 = vld [vmem:[%s4 + $0x70] sm:$0xff]
        %v779 = vld [vmem:[%s4 + $0x78] sm:$0xff]
        %781 = vset.pattern.permute.xlu0 0
        %782 = vperm.xlu0 %781, %v764
        %v783 = vpop.permute.xlu0 %782
        %786 = vset.pattern.permute.xlu0 0
        %787 = vperm.xlu0 %786, %v765
        %v788 = vpop.permute.xlu0 %787
        %791 = vset.pattern.permute.xlu0 0
        %792 = vperm.xlu0 %791, %v766
        %v793 = vpop.permute.xlu0 %792
        %796 = vset.pattern.permute.xlu0 0
        %797 = vperm.xlu0 %796, %v767
        %v798 = vpop.permute.xlu0 %797
        %801 = vset.pattern.permute.xlu0 0
        %802 = vperm.xlu0 %801, %v768
        %v803 = vpop.permute.xlu0 %802
        %806 = vset.pattern.permute.xlu0 0
        %807 = vperm.xlu0 %806, %v769
        %v808 = vpop.permute.xlu0 %807
        %811 = vset.pattern.permute.xlu0 0
        %812 = vperm.xlu0 %811, %v770
        %v813 = vpop.permute.xlu0 %812
        %816 = vset.pattern.permute.xlu0 0
        %817 = vperm.xlu0 %816, %v771
        %v818 = vpop.permute.xlu0 %817
        %821 = vset.pattern.permute.xlu0 0
        %822 = vperm.xlu0 %821, %v772
        %v823 = vpop.permute.xlu0 %822
        %826 = vset.pattern.permute.xlu0 0
        %827 = vperm.xlu0 %826, %v773
        %v828 = vpop.permute.xlu0 %827
        %831 = vset.pattern.permute.xlu0 0
        %832 = vperm.xlu0 %831, %v774
        %v833 = vpop.permute.xlu0 %832
        %836 = vset.pattern.permute.xlu0 0
        %837 = vperm.xlu0 %836, %v775
        %v838 = vpop.permute.xlu0 %837
        %841 = vset.pattern.permute.xlu0 0
        %842 = vperm.xlu0 %841, %v776
        %v843 = vpop.permute.xlu0 %842
        %846 = vset.pattern.permute.xlu0 0
        %847 = vperm.xlu0 %846, %v777
        %v848 = vpop.permute.xlu0 %847
        %851 = vset.pattern.permute.xlu0 0
        %852 = vperm.xlu0 %851, %v778
        %v853 = vpop.permute.xlu0 %852
        %856 = vset.pattern.permute.xlu0 0
        %857 = vperm.xlu0 %856, %v779
        %v858 = vpop.permute.xlu0 %857
        %v876 = vunpack.c.l.b16 %v732
        %v877 = vunpack.c.l.b16 %v733
        %v878 = vunpack.c.l.b16 %v734
        %v879 = vunpack.c.l.b16 %v735
        %v880 = vunpack.c.l.b16 %v736
        %v881 = vunpack.c.l.b16 %v737
        %v882 = vunpack.c.l.b16 %v738
        %v883 = vunpack.c.l.b16 %v739
        %v884 = vunpack.c.l.b16 %v740
        %v885 = vunpack.c.l.b16 %v741
        %v886 = vunpack.c.l.b16 %v742
        %v887 = vunpack.c.l.b16 %v743
        %v888 = vunpack.c.l.b16 %v744
        %v889 = vunpack.c.l.b16 %v745
        %v890 = vunpack.c.l.b16 %v746
        %v891 = vunpack.c.l.b16 %v747
        %v892 = vpack.c.b16 %v877, %v876
        %v893 = vpack.c.b16 %v879, %v878
        %v894 = vpack.c.b16 %v881, %v880
        %v895 = vpack.c.b16 %v883, %v882
        %v896 = vpack.c.b16 %v885, %v884
        %v897 = vpack.c.b16 %v887, %v886
        %v898 = vpack.c.b16 %v889, %v888
        %v899 = vpack.c.b16 %v891, %v890
        %vm900 = vcmask 523264
        %v902 = vsel %vm900, %v892, 0
        %v905 = vsel %vm900, %v893, 0
        %v908 = vsel %vm900, %v894, 0
        %v911 = vsel %vm900, %v895, 0
        %v914 = vsel %vm900, %v896, 0
        %v917 = vsel %vm900, %v897, 0
        %v920 = vsel %vm900, %v898, 0
        %v923 = vsel %vm900, %v899, 0
        %925 = vmatprep.subr.bf16.mxu0 0
        %926 = vmatpush1.bf16.msra.mxu0 0
        %927 = vmatprep.subr.bf16.mxu0 0
        %928 = vmatpush1.bf16.msra.mxu0 0
        %929 = vmatprep.subr.bf16.mxu0 0
        %930 = vmatpush1.bf16.msra.mxu0 0
        %931 = vmatprep.subr.bf16.mxu0 0
        %932 = vmatpush1.bf16.msra.mxu0 0
        %933 = vmatprep.subr.bf16.mxu0 %v761
        %934 = vmatpush1.bf16.msra.mxu0 %v760
        %935 = vmatprep.subr.bf16.mxu0 %v757
        %936 = vmatpush1.bf16.msra.mxu0 %v756
        %937 = vmatprep.subr.bf16.mxu0 %v753
        %938 = vmatpush1.bf16.msra.mxu0 %v752
        %939 = vmatprep.subr.bf16.mxu0 %v749
        %940 = vmatpush1.bf16.msra.mxu0 %v748
        %941 = vmatprep.subr.bf16.mxu0 0
        %942 = vmatpush2.bf16.msra.mxu0 0
        %943 = vmatprep.subr.bf16.mxu0 0
        %944 = vmatpush2.bf16.msra.mxu0 0
        %945 = vmatprep.subr.bf16.mxu0 0
        %946 = vmatpush2.bf16.msra.mxu0 0
        %947 = vmatprep.subr.bf16.mxu0 0
        %948 = vmatpush2.bf16.msra.mxu0 0
        %949 = vmatprep.subr.bf16.mxu0 0
        %950 = vmatpush2.bf16.msra.mxu0 0
        %951 = vmatprep.subr.bf16.mxu0 0
        %952 = vmatpush2.bf16.msra.mxu0 0
        %953 = vmatprep.subr.bf16.mxu0 0
        %954 = vmatpush2.bf16.msra.mxu0 0
        %955 = vmatprep.subr.bf16.mxu0 0
        %956 = vmatpush2.bf16.msra.mxu0 0
        %957 = vmatprep.mubr.bf16.mxu0 0
        %958 = vmatmul.mubr.bf16.gmra.mxu0 %v902
        %v959 = vpop.f32.mrf.mxu0
        %v960 = vadd.f32 %v783, %v959
        %v961 = vpop.f32.mrf.mxu0
        %v962 = vadd.f32 %v783, %v961
        %v963 = vpop.f32.mrf.mxu0
        %v964 = vadd.f32 %v788, %v963
        %v965 = vpop.f32.mrf.mxu0
        %v966 = vadd.f32 %v788, %v965
        %967 = vmatprep.mubr.bf16.mxu0 0
        %968 = vmatmul.mubr.bf16.gmra.mxu0 %v905
        %v969 = vpop.f32.mrf.mxu0
        %v970 = vadd.f32 %v793, %v969
        %v971 = vpop.f32.mrf.mxu0
        %v972 = vadd.f32 %v793, %v971
        %v973 = vpop.f32.mrf.mxu0
        %v974 = vadd.f32 %v798, %v973
        %v975 = vpop.f32.mrf.mxu0
        %v976 = vadd.f32 %v798, %v975
        %977 = vmatprep.mubr.bf16.mxu0 0
        %978 = vmatmul.mubr.bf16.gmra.mxu0 %v908
        %v979 = vpop.f32.mrf.mxu0
        %v980 = vadd.f32 %v803, %v979
        %v981 = vpop.f32.mrf.mxu0
        %v982 = vadd.f32 %v803, %v981
        %v983 = vpop.f32.mrf.mxu0
        %v984 = vadd.f32 %v808, %v983
        %v985 = vpop.f32.mrf.mxu0
        %v986 = vadd.f32 %v808, %v985
        %987 = vmatprep.mubr.bf16.mxu0 0
        %988 = vmatmul.mubr.bf16.gmra.mxu0 %v911
        %v989 = vpop.f32.mrf.mxu0
        %v990 = vadd.f32 %v813, %v989
        %v991 = vpop.f32.mrf.mxu0
        %v992 = vadd.f32 %v813, %v991
        %v993 = vpop.f32.mrf.mxu0
        %v994 = vadd.f32 %v818, %v993
        %v995 = vpop.f32.mrf.mxu0
        %v996 = vadd.f32 %v818, %v995
        %997 = vmatprep.mubr.bf16.mxu0 0
        %998 = vmatmul.mubr.bf16.gmra.mxu0 %v914
        %v999 = vpop.f32.mrf.mxu0
        %v1000 = vadd.f32 %v823, %v999
        %v1001 = vpop.f32.mrf.mxu0
        %v1002 = vadd.f32 %v823, %v1001
        %v1003 = vpop.f32.mrf.mxu0
        %v1004 = vadd.f32 %v828, %v1003
        %v1005 = vpop.f32.mrf.mxu0
        %v1006 = vadd.f32 %v828, %v1005
        %1007 = vmatprep.mubr.bf16.mxu0 0
        %1008 = vmatmul.mubr.bf16.gmra.mxu0 %v917
        %v1009 = vpop.f32.mrf.mxu0
        %v1010 = vadd.f32 %v833, %v1009
        %v1011 = vpop.f32.mrf.mxu0
        %v1012 = vadd.f32 %v833, %v1011
        %v1013 = vpop.f32.mrf.mxu0
        %v1014 = vadd.f32 %v838, %v1013
        %v1015 = vpop.f32.mrf.mxu0
        %v1016 = vadd.f32 %v838, %v1015
        %1017 = vmatprep.mubr.bf16.mxu0 0
        %1018 = vmatmul.mubr.bf16.gmra.mxu0 %v920
        %v1019 = vpop.f32.mrf.mxu0
        %v1020 = vadd.f32 %v843, %v1019
        %v1021 = vpop.f32.mrf.mxu0
        %v1022 = vadd.f32 %v843, %v1021
        %v1023 = vpop.f32.mrf.mxu0
        %v1024 = vadd.f32 %v848, %v1023
        %v1025 = vpop.f32.mrf.mxu0
        %v1026 = vadd.f32 %v848, %v1025
        %1027 = vmatprep.mubr.bf16.mxu0 0
        %1028 = vmatmul.mubr.bf16.gmra.mxu0 %v923
        %v1029 = vpop.f32.mrf.mxu0
        %v1030 = vadd.f32 %v853, %v1029
        %v1031 = vpop.f32.mrf.mxu0
        %v1032 = vadd.f32 %v853, %v1031
        %v1033 = vpop.f32.mrf.mxu0
        %v1034 = vadd.f32 %v858, %v1033
        %v1035 = vpop.f32.mrf.mxu0
        %v1036 = vadd.f32 %v858, %v1035
        %1037 = vdwg.mxu0
        %1038 = vmatprep.subr.bf16.mxu0 0
        %1039 = vmatpush1.bf16.msra.mxu0 0
        %1040 = vmatprep.subr.bf16.mxu0 0
        %1041 = vmatpush1.bf16.msra.mxu0 0
        %1042 = vmatprep.subr.bf16.mxu0 0
        %1043 = vmatpush1.bf16.msra.mxu0 0
        %1044 = vmatprep.subr.bf16.mxu0 0
        %1045 = vmatpush1.bf16.msra.mxu0 0
        %1046 = vmatprep.subr.bf16.mxu0 %v763
        %1047 = vmatpush1.bf16.msra.mxu0 %v762
        %1048 = vmatprep.subr.bf16.mxu0 %v759
        %1049 = vmatpush1.bf16.msra.mxu0 %v758
        %1050 = vmatprep.subr.bf16.mxu0 %v755
        %1051 = vmatpush1.bf16.msra.mxu0 %v754
        %1052 = vmatprep.subr.bf16.mxu0 %v751
        %1053 = vmatpush1.bf16.msra.mxu0 %v750
        %1054 = vmatprep.subr.bf16.mxu0 0
        %1055 = vmatpush2.bf16.msra.mxu0 0
        %1056 = vmatprep.subr.bf16.mxu0 0
        %1057 = vmatpush2.bf16.msra.mxu0 0
        %1058 = vmatprep.subr.bf16.mxu0 0
        %1059 = vmatpush2.bf16.msra.mxu0 0
        %1060 = vmatprep.subr.bf16.mxu0 0
        %1061 = vmatpush2.bf16.msra.mxu0 0
        %1062 = vmatprep.subr.bf16.mxu0 0
        %1063 = vmatpush2.bf16.msra.mxu0 0
        %1064 = vmatprep.subr.bf16.mxu0 0
        %1065 = vmatpush2.bf16.msra.mxu0 0
        %1066 = vmatprep.subr.bf16.mxu0 0
        %1067 = vmatpush2.bf16.msra.mxu0 0
        %1068 = vmatprep.subr.bf16.mxu0 0
        %1069 = vmatpush2.bf16.msra.mxu0 0
        %1070 = vmatprep.mubr.bf16.mxu0 0
        %1071 = vmatmul.mubr.bf16.gmra.mxu0 %v902
        %v1072 = vpop.f32.mrf.mxu0
        %v1073 = vadd.f32 %v783, %v1072
        %v1074 = vpop.f32.mrf.mxu0
        %v1075 = vadd.f32 %v783, %v1074
        %v1076 = vpop.f32.mrf.mxu0
        %v1077 = vadd.f32 %v788, %v1076
        %v1078 = vpop.f32.mrf.mxu0
        %v1079 = vadd.f32 %v788, %v1078
        %1080 = vmatprep.mubr.bf16.mxu0 0
        %1081 = vmatmul.mubr.bf16.gmra.mxu0 %v905
        %v1082 = vpop.f32.mrf.mxu0
        %v1083 = vadd.f32 %v793, %v1082
        %v1084 = vpop.f32.mrf.mxu0
        %v1085 = vadd.f32 %v793, %v1084
        %v1086 = vpop.f32.mrf.mxu0
        %v1087 = vadd.f32 %v798, %v1086
        %v1088 = vpop.f32.mrf.mxu0
        %v1089 = vadd.f32 %v798, %v1088
        %1090 = vmatprep.mubr.bf16.mxu0 0
        %1091 = vmatmul.mubr.bf16.gmra.mxu0 %v908
        %v1092 = vpop.f32.mrf.mxu0
        %v1093 = vadd.f32 %v803, %v1092
        %v1094 = vpop.f32.mrf.mxu0
        %v1095 = vadd.f32 %v803, %v1094
        %v1096 = vpop.f32.mrf.mxu0
        %v1097 = vadd.f32 %v808, %v1096
        %v1098 = vpop.f32.mrf.mxu0
        %v1099 = vadd.f32 %v808, %v1098
        %1100 = vmatprep.mubr.bf16.mxu0 0
        %1101 = vmatmul.mubr.bf16.gmra.mxu0 %v911
        %v1102 = vpop.f32.mrf.mxu0
        %v1103 = vadd.f32 %v813, %v1102
        %v1104 = vpop.f32.mrf.mxu0
        %v1105 = vadd.f32 %v813, %v1104
        %v1106 = vpop.f32.mrf.mxu0
        %v1107 = vadd.f32 %v818, %v1106
        %v1108 = vpop.f32.mrf.mxu0
        %v1109 = vadd.f32 %v818, %v1108
        %1110 = vmatprep.mubr.bf16.mxu0 0
        %1111 = vmatmul.mubr.bf16.gmra.mxu0 %v914
        %v1112 = vpop.f32.mrf.mxu0
        %v1113 = vadd.f32 %v823, %v1112
        %v1114 = vpop.f32.mrf.mxu0
        %v1115 = vadd.f32 %v823, %v1114
        %v1116 = vpop.f32.mrf.mxu0
        %v1117 = vadd.f32 %v828, %v1116
        %v1118 = vpop.f32.mrf.mxu0
        %v1119 = vadd.f32 %v828, %v1118
        %1120 = vmatprep.mubr.bf16.mxu0 0
        %1121 = vmatmul.mubr.bf16.gmra.mxu0 %v917
        %v1122 = vpop.f32.mrf.mxu0
        %v1123 = vadd.f32 %v833, %v1122
        %v1124 = vpop.f32.mrf.mxu0
        %v1125 = vadd.f32 %v833, %v1124
        %v1126 = vpop.f32.mrf.mxu0
        %v1127 = vadd.f32 %v838, %v1126
        %v1128 = vpop.f32.mrf.mxu0
        %v1129 = vadd.f32 %v838, %v1128
        %1130 = vmatprep.mubr.bf16.mxu0 0
        %1131 = vmatmul.mubr.bf16.gmra.mxu0 %v920
        %v1132 = vpop.f32.mrf.mxu0
        %v1133 = vadd.f32 %v843, %v1132
        %v1134 = vpop.f32.mrf.mxu0
        %v1135 = vadd.f32 %v843, %v1134
        %v1136 = vpop.f32.mrf.mxu0
        %v1137 = vadd.f32 %v848, %v1136
        %v1138 = vpop.f32.mrf.mxu0
        %v1139 = vadd.f32 %v848, %v1138
        %1140 = vmatprep.mubr.bf16.mxu0 0
        %1141 = vmatmul.mubr.bf16.gmra.mxu0 %v923
        %v1142 = vpop.f32.mrf.mxu0
        %v1143 = vadd.f32 %v853, %v1142
        %v1144 = vpop.f32.mrf.mxu0
        %v1145 = vadd.f32 %v853, %v1144
        %v1146 = vpop.f32.mrf.mxu0
        %v1147 = vadd.f32 %v858, %v1146
        %v1148 = vpop.f32.mrf.mxu0
        %v1149 = vadd.f32 %v858, %v1148
        %1150 = vdwg.mxu0
        %v1151 = vmax.f32 %v960, 0.0
        %v1152 = vmax.f32 %v962, 0.0
        %v1153 = vmax.f32 %v1073, 0.0
        %v1154 = vmax.f32 %v1075, 0.0
        %v1155 = vmax.f32 %v964, 0.0
        %v1156 = vmax.f32 %v966, 0.0
        %v1157 = vmax.f32 %v1077, 0.0
        %v1158 = vmax.f32 %v1079, 0.0
        %v1159 = vmax.f32 %v970, 0.0
        %v1160 = vmax.f32 %v972, 0.0
        %v1161 = vmax.f32 %v1083, 0.0
        %v1162 = vmax.f32 %v1085, 0.0
        %v1163 = vmax.f32 %v974, 0.0
        %v1164 = vmax.f32 %v976, 0.0
        %v1165 = vmax.f32 %v1087, 0.0
        %v1166 = vmax.f32 %v1089, 0.0
        %v1167 = vmax.f32 %v980, 0.0
        %v1168 = vmax.f32 %v982, 0.0
        %v1169 = vmax.f32 %v1093, 0.0
        %v1170 = vmax.f32 %v1095, 0.0
        %v1171 = vmax.f32 %v984, 0.0
        %v1172 = vmax.f32 %v986, 0.0
        %v1173 = vmax.f32 %v1097, 0.0
        %v1174 = vmax.f32 %v1099, 0.0
        %v1175 = vmax.f32 %v990, 0.0
        %v1176 = vmax.f32 %v992, 0.0
        %v1177 = vmax.f32 %v1103, 0.0
        %v1178 = vmax.f32 %v1105, 0.0
        %v1179 = vmax.f32 %v994, 0.0
        %v1180 = vmax.f32 %v996, 0.0
        %v1181 = vmax.f32 %v1107, 0.0
        %v1182 = vmax.f32 %v1109, 0.0
        %v1183 = vmax.f32 %v1000, 0.0
        %v1184 = vmax.f32 %v1002, 0.0
        %v1185 = vmax.f32 %v1113, 0.0
        %v1186 = vmax.f32 %v1115, 0.0
        %v1187 = vmax.f32 %v1004, 0.0
        %v1188 = vmax.f32 %v1006, 0.0
        %v1189 = vmax.f32 %v1117, 0.0
        %v1190 = vmax.f32 %v1119, 0.0
        %v1191 = vmax.f32 %v1010, 0.0
        %v1192 = vmax.f32 %v1012, 0.0
        %v1193 = vmax.f32 %v1123, 0.0
        %v1194 = vmax.f32 %v1125, 0.0
        %v1195 = vmax.f32 %v1014, 0.0
        %v1196 = vmax.f32 %v1016, 0.0
        %v1197 = vmax.f32 %v1127, 0.0
        %v1198 = vmax.f32 %v1129, 0.0
        %v1199 = vmax.f32 %v1020, 0.0
        %v1200 = vmax.f32 %v1022, 0.0
        %v1201 = vmax.f32 %v1133, 0.0
        %v1202 = vmax.f32 %v1135, 0.0
        %v1203 = vmax.f32 %v1024, 0.0
        %v1204 = vmax.f32 %v1026, 0.0
        %v1205 = vmax.f32 %v1137, 0.0
        %v1206 = vmax.f32 %v1139, 0.0
        %v1207 = vmax.f32 %v1030, 0.0
        %v1208 = vmax.f32 %v1032, 0.0
        %v1209 = vmax.f32 %v1143, 0.0
        %v1210 = vmax.f32 %v1145, 0.0
        %v1211 = vmax.f32 %v1034, 0.0
        %v1212 = vmax.f32 %v1036, 0.0
        %v1213 = vmax.f32 %v1147, 0.0
        %v1214 = vmax.f32 %v1149, 0.0
        %v1215 = vld [vmem:[%s5] sm:$0xf]
        %v1216 = vld [vmem:[%s5 + $0x4] sm:$0xf]
        %v1217 = vld [vmem:[%s5 + $0x8] sm:$0xf]
        %v1218 = vld [vmem:[%s5 + $0xc] sm:$0xf]
        %v1219 = vld [vmem:[%s5 + $0x10] sm:$0xf]
        %v1220 = vld [vmem:[%s5 + $0x14] sm:$0xf]
        %v1221 = vld [vmem:[%s5 + $0x18] sm:$0xf]
        %v1222 = vld [vmem:[%s5 + $0x1c] sm:$0xf]
        %v1223 = vld [vmem:[%s5 + $0x20] sm:$0xf]
        %v1224 = vld [vmem:[%s5 + $0x24] sm:$0xf]
        %v1225 = vld [vmem:[%s5 + $0x28] sm:$0xf]
        %v1226 = vld [vmem:[%s5 + $0x2c] sm:$0xf]
        %v1227 = vld [vmem:[%s5 + $0x30] sm:$0xf]
        %v1228 = vld [vmem:[%s5 + $0x34] sm:$0xf]
        %v1229 = vld [vmem:[%s5 + $0x38] sm:$0xf]
        %v1230 = vld [vmem:[%s5 + $0x3c] sm:$0xf]
        %v1231 = vld [vmem:[%s5 + $0x40] sm:$0xf]
        %v1232 = vld [vmem:[%s5 + $0x44] sm:$0xf]
        %v1233 = vld [vmem:[%s5 + $0x48] sm:$0xf]
        %v1234 = vld [vmem:[%s5 + $0x4c] sm:$0xf]
        %v1235 = vld [vmem:[%s5 + $0x50] sm:$0xf]
        %v1236 = vld [vmem:[%s5 + $0x54] sm:$0xf]
        %v1237 = vld [vmem:[%s5 + $0x58] sm:$0xf]
        %v1238 = vld [vmem:[%s5 + $0x5c] sm:$0xf]
        %v1239 = vld [vmem:[%s5 + $0x60] sm:$0xf]
        %v1240 = vld [vmem:[%s5 + $0x64] sm:$0xf]
        %v1241 = vld [vmem:[%s5 + $0x68] sm:$0xf]
        %v1242 = vld [vmem:[%s5 + $0x6c] sm:$0xf]
        %v1243 = vld [vmem:[%s5 + $0x70] sm:$0xf]
        %v1244 = vld [vmem:[%s5 + $0x74] sm:$0xf]
        %v1245 = vld [vmem:[%s5 + $0x78] sm:$0xf]
        %v1246 = vld [vmem:[%s5 + $0x7c] sm:$0xf]
        %v1247 = vpack.c.bf16 %v1155, %v1151
        %v1248 = vpack.c.bf16 %v1156, %v1152
        %v1249 = vpack.c.bf16 %v1157, %v1153
        %v1250 = vpack.c.bf16 %v1158, %v1154
        %v1251 = vpack.c.bf16 %v1163, %v1159
        %v1252 = vpack.c.bf16 %v1164, %v1160
        %v1253 = vpack.c.bf16 %v1165, %v1161
        %v1254 = vpack.c.bf16 %v1166, %v1162
        %v1255 = vpack.c.bf16 %v1171, %v1167
        %v1256 = vpack.c.bf16 %v1172, %v1168
        %v1257 = vpack.c.bf16 %v1173, %v1169
        %v1258 = vpack.c.bf16 %v1174, %v1170
        %v1259 = vpack.c.bf16 %v1179, %v1175
        %v1260 = vpack.c.bf16 %v1180, %v1176
        %v1261 = vpack.c.bf16 %v1181, %v1177
        %v1262 = vpack.c.bf16 %v1182, %v1178
        %v1263 = vpack.c.bf16 %v1187, %v1183
        %v1264 = vpack.c.bf16 %v1188, %v1184
        %v1265 = vpack.c.bf16 %v1189, %v1185
        %v1266 = vpack.c.bf16 %v1190, %v1186
        %v1267 = vpack.c.bf16 %v1195, %v1191
        %v1268 = vpack.c.bf16 %v1196, %v1192
        %v1269 = vpack.c.bf16 %v1197, %v1193
        %v1270 = vpack.c.bf16 %v1198, %v1194
        %v1271 = vpack.c.bf16 %v1203, %v1199
        %v1272 = vpack.c.bf16 %v1204, %v1200
        %v1273 = vpack.c.bf16 %v1205, %v1201
        %v1274 = vpack.c.bf16 %v1206, %v1202
        %v1275 = vpack.c.bf16 %v1211, %v1207
        %v1276 = vpack.c.bf16 %v1212, %v1208
        %v1277 = vpack.c.bf16 %v1213, %v1209
        %v1278 = vpack.c.bf16 %v1214, %v1210
        %v1279 = vld [vmem:[%s6] sm:$0xff]
        %v1280 = vld [vmem:[%s6 + $0x8] sm:$0xff]
        %v1281 = vld [vmem:[%s6 + $0x10] sm:$0xff]
        %v1282 = vld [vmem:[%s6 + $0x18] sm:$0xff]
        %v1283 = vld [vmem:[%s6 + $0x20] sm:$0xff]
        %v1284 = vld [vmem:[%s6 + $0x28] sm:$0xff]
        %v1285 = vld [vmem:[%s6 + $0x30] sm:$0xff]
        %v1286 = vld [vmem:[%s6 + $0x38] sm:$0xff]
        %v1287 = vld [vmem:[%s6 + $0x40] sm:$0xff]
        %v1288 = vld [vmem:[%s6 + $0x48] sm:$0xff]
        %v1289 = vld [vmem:[%s6 + $0x50] sm:$0xff]
        %v1290 = vld [vmem:[%s6 + $0x58] sm:$0xff]
        %v1291 = vld [vmem:[%s6 + $0x60] sm:$0xff]
        %v1292 = vld [vmem:[%s6 + $0x68] sm:$0xff]
        %v1293 = vld [vmem:[%s6 + $0x70] sm:$0xff]
        %v1294 = vld [vmem:[%s6 + $0x78] sm:$0xff]
        %v1295 = vld [vmem:[%s6 + $0x80] sm:$0xff]
        %v1296 = vld [vmem:[%s6 + $0x88] sm:$0xff]
        %v1297 = vld [vmem:[%s6 + $0x90] sm:$0xff]
        %v1298 = vld [vmem:[%s6 + $0x98] sm:$0xff]
        %v1299 = vld [vmem:[%s6 + $0xa0] sm:$0xff]
        %v1300 = vld [vmem:[%s6 + $0xa8] sm:$0xff]
        %v1301 = vld [vmem:[%s6 + $0xb0] sm:$0xff]
        %v1302 = vld [vmem:[%s6 + $0xb8] sm:$0xff]
        %v1303 = vld [vmem:[%s6 + $0xc0] sm:$0xff]
        %v1304 = vld [vmem:[%s6 + $0xc8] sm:$0xff]
        %v1305 = vld [vmem:[%s6 + $0xd0] sm:$0xff]
        %v1306 = vld [vmem:[%s6 + $0xd8] sm:$0xff]
        %v1307 = vld [vmem:[%s6 + $0xe0] sm:$0xff]
        %v1308 = vld [vmem:[%s6 + $0xe8] sm:$0xff]
        %v1309 = vld [vmem:[%s6 + $0xf0] sm:$0xff]
        %v1310 = vld [vmem:[%s6 + $0xf8] sm:$0xff]
        %1312 = vset.pattern.permute.xlu0 0
        %1313 = vperm.xlu0 %1312, %v1279
        %v1314 = vpop.permute.xlu0 %1313
        %1317 = vset.pattern.permute.xlu0 0
        %1318 = vperm.xlu0 %1317, %v1280
        %v1319 = vpop.permute.xlu0 %1318
        %1322 = vset.pattern.permute.xlu0 0
        %1323 = vperm.xlu0 %1322, %v1281
        %v1324 = vpop.permute.xlu0 %1323
        %1327 = vset.pattern.permute.xlu0 0
        %1328 = vperm.xlu0 %1327, %v1282
        %v1329 = vpop.permute.xlu0 %1328
        %1332 = vset.pattern.permute.xlu0 0
        %1333 = vperm.xlu0 %1332, %v1283
        %v1334 = vpop.permute.xlu0 %1333
        %1337 = vset.pattern.permute.xlu0 0
        %1338 = vperm.xlu0 %1337, %v1284
        %v1339 = vpop.permute.xlu0 %1338
        %1342 = vset.pattern.permute.xlu0 0
        %1343 = vperm.xlu0 %1342, %v1285
        %v1344 = vpop.permute.xlu0 %1343
        %1347 = vset.pattern.permute.xlu0 0
        %1348 = vperm.xlu0 %1347, %v1286
        %v1349 = vpop.permute.xlu0 %1348
        %1352 = vset.pattern.permute.xlu0 0
        %1353 = vperm.xlu0 %1352, %v1287
        %v1354 = vpop.permute.xlu0 %1353
        %1357 = vset.pattern.permute.xlu0 0
        %1358 = vperm.xlu0 %1357, %v1288
        %v1359 = vpop.permute.xlu0 %1358
        %1362 = vset.pattern.permute.xlu0 0
        %1363 = vperm.xlu0 %1362, %v1289
        %v1364 = vpop.permute.xlu0 %1363
        %1367 = vset.pattern.permute.xlu0 0
        %1368 = vperm.xlu0 %1367, %v1290
        %v1369 = vpop.permute.xlu0 %1368
        %1372 = vset.pattern.permute.xlu0 0
        %1373 = vperm.xlu0 %1372, %v1291
        %v1374 = vpop.permute.xlu0 %1373
        %1377 = vset.pattern.permute.xlu0 0
        %1378 = vperm.xlu0 %1377, %v1292
        %v1379 = vpop.permute.xlu0 %1378
        %1382 = vset.pattern.permute.xlu0 0
        %1383 = vperm.xlu0 %1382, %v1293
        %v1384 = vpop.permute.xlu0 %1383
        %1387 = vset.pattern.permute.xlu0 0
        %1388 = vperm.xlu0 %1387, %v1294
        %v1389 = vpop.permute.xlu0 %1388
        %1392 = vset.pattern.permute.xlu0 0
        %1393 = vperm.xlu0 %1392, %v1295
        %v1394 = vpop.permute.xlu0 %1393
        %1397 = vset.pattern.permute.xlu0 0
        %1398 = vperm.xlu0 %1397, %v1296
        %v1399 = vpop.permute.xlu0 %1398
        %1402 = vset.pattern.permute.xlu0 0
        %1403 = vperm.xlu0 %1402, %v1297
        %v1404 = vpop.permute.xlu0 %1403
        %1407 = vset.pattern.permute.xlu0 0
        %1408 = vperm.xlu0 %1407, %v1298
        %v1409 = vpop.permute.xlu0 %1408
        %1412 = vset.pattern.permute.xlu0 0
        %1413 = vperm.xlu0 %1412, %v1299
        %v1414 = vpop.permute.xlu0 %1413
        %1417 = vset.pattern.permute.xlu0 0
        %1418 = vperm.xlu0 %1417, %v1300
        %v1419 = vpop.permute.xlu0 %1418
        %1422 = vset.pattern.permute.xlu0 0
        %1423 = vperm.xlu0 %1422, %v1301
        %v1424 = vpop.permute.xlu0 %1423
        %1427 = vset.pattern.permute.xlu0 0
        %1428 = vperm.xlu0 %1427, %v1302
        %v1429 = vpop.permute.xlu0 %1428
        %1432 = vset.pattern.permute.xlu0 0
        %1433 = vperm.xlu0 %1432, %v1303
        %v1434 = vpop.permute.xlu0 %1433
        %1437 = vset.pattern.permute.xlu0 0
        %1438 = vperm.xlu0 %1437, %v1304
        %v1439 = vpop.permute.xlu0 %1438
        %1442 = vset.pattern.permute.xlu0 0
        %1443 = vperm.xlu0 %1442, %v1305
        %v1444 = vpop.permute.xlu0 %1443
        %1447 = vset.pattern.permute.xlu0 0
        %1448 = vperm.xlu0 %1447, %v1306
        %v1449 = vpop.permute.xlu0 %1448
        %1452 = vset.pattern.permute.xlu0 0
        %1453 = vperm.xlu0 %1452, %v1307
        %v1454 = vpop.permute.xlu0 %1453
        %1457 = vset.pattern.permute.xlu0 0
        %1458 = vperm.xlu0 %1457, %v1308
        %v1459 = vpop.permute.xlu0 %1458
        %1462 = vset.pattern.permute.xlu0 0
        %1463 = vperm.xlu0 %1462, %v1309
        %v1464 = vpop.permute.xlu0 %1463
        %1467 = vset.pattern.permute.xlu0 0
        %1468 = vperm.xlu0 %1467, %v1310
        %v1469 = vpop.permute.xlu0 %1468
        %v1503 = vunpack.c.l.b16 %v1215
        %v1504 = vunpack.c.l.b16 %v1216
        %v1505 = vunpack.c.l.b16 %v1217
        %v1506 = vunpack.c.l.b16 %v1218
        %v1507 = vunpack.c.l.b16 %v1219
        %v1508 = vunpack.c.l.b16 %v1220
        %v1509 = vunpack.c.l.b16 %v1221
        %v1510 = vunpack.c.l.b16 %v1222
        %v1511 = vunpack.c.l.b16 %v1223
        %v1512 = vunpack.c.l.b16 %v1224
        %v1513 = vunpack.c.l.b16 %v1225
        %v1514 = vunpack.c.l.b16 %v1226
        %v1515 = vunpack.c.l.b16 %v1227
        %v1516 = vunpack.c.l.b16 %v1228
        %v1517 = vunpack.c.l.b16 %v1229
        %v1518 = vunpack.c.l.b16 %v1230
        %v1519 = vunpack.c.l.b16 %v1231
        %v1520 = vunpack.c.l.b16 %v1232
        %v1521 = vunpack.c.l.b16 %v1233
        %v1522 = vunpack.c.l.b16 %v1234
        %v1523 = vunpack.c.l.b16 %v1235
        %v1524 = vunpack.c.l.b16 %v1236
        %v1525 = vunpack.c.l.b16 %v1237
        %v1526 = vunpack.c.l.b16 %v1238
        %v1527 = vunpack.c.l.b16 %v1239
        %v1528 = vunpack.c.l.b16 %v1240
        %v1529 = vunpack.c.l.b16 %v1241
        %v1530 = vunpack.c.l.b16 %v1242
        %v1531 = vunpack.c.l.b16 %v1243
        %v1532 = vunpack.c.l.b16 %v1244
        %v1533 = vunpack.c.l.b16 %v1245
        %v1534 = vunpack.c.l.b16 %v1246
        %v1535 = vpack.c.b16 %v1504, %v1503
        %v1536 = vpack.c.b16 %v1506, %v1505
        %v1537 = vpack.c.b16 %v1508, %v1507
        %v1538 = vpack.c.b16 %v1510, %v1509
        %v1539 = vpack.c.b16 %v1512, %v1511
        %v1540 = vpack.c.b16 %v1514, %v1513
        %v1541 = vpack.c.b16 %v1516, %v1515
        %v1542 = vpack.c.b16 %v1518, %v1517
        %v1543 = vpack.c.b16 %v1520, %v1519
        %v1544 = vpack.c.b16 %v1522, %v1521
        %v1545 = vpack.c.b16 %v1524, %v1523
        %v1546 = vpack.c.b16 %v1526, %v1525
        %v1547 = vpack.c.b16 %v1528, %v1527
        %v1548 = vpack.c.b16 %v1530, %v1529
        %v1549 = vpack.c.b16 %v1532, %v1531
        %v1550 = vpack.c.b16 %v1534, %v1533
        %1567 = vmatprep.subr.bf16.mxu0 %v1276
        %1568 = vmatpush1.bf16.msra.mxu0 %v1275
        %1569 = vmatprep.subr.bf16.mxu0 %v1272
        %1570 = vmatpush1.bf16.msra.mxu0 %v1271
        %1571 = vmatprep.subr.bf16.mxu0 %v1268
        %1572 = vmatpush1.bf16.msra.mxu0 %v1267
        %1573 = vmatprep.subr.bf16.mxu0 %v1264
        %1574 = vmatpush1.bf16.msra.mxu0 %v1263
        %1575 = vmatprep.subr.bf16.mxu0 %v1260
        %1576 = vmatpush1.bf16.msra.mxu0 %v1259
        %1577 = vmatprep.subr.bf16.mxu0 %v1256
        %1578 = vmatpush1.bf16.msra.mxu0 %v1255
        %1579 = vmatprep.subr.bf16.mxu0 %v1252
        %1580 = vmatpush1.bf16.msra.mxu0 %v1251
        %1581 = vmatprep.subr.bf16.mxu0 %v1248
        %1582 = vmatpush1.bf16.msra.mxu0 %v1247
        %1583 = vmatprep.subr.bf16.mxu0 0
        %1584 = vmatpush2.bf16.msra.mxu0 0
        %1585 = vmatprep.subr.bf16.mxu0 0
        %1586 = vmatpush2.bf16.msra.mxu0 0
        %1587 = vmatprep.subr.bf16.mxu0 0
        %1588 = vmatpush2.bf16.msra.mxu0 0
        %1589 = vmatprep.subr.bf16.mxu0 0
        %1590 = vmatpush2.bf16.msra.mxu0 0
        %1591 = vmatprep.subr.bf16.mxu0 0
        %1592 = vmatpush2.bf16.msra.mxu0 0
        %1593 = vmatprep.subr.bf16.mxu0 0
        %1594 = vmatpush2.bf16.msra.mxu0 0
        %1595 = vmatprep.subr.bf16.mxu0 0
        %1596 = vmatpush2.bf16.msra.mxu0 0
        %1597 = vmatprep.subr.bf16.mxu0 0
        %1598 = vmatpush2.bf16.msra.mxu0 0
        %1599 = vmatprep.mubr.bf16.mxu0 0
        %1600 = vmatmul.mubr.bf16.gmra.mxu0 %v1535
        %v1601 = vpop.f32.mrf.mxu0
        %v1602 = vadd.f32 %v1314, %v1601
        %v1603 = vpop.f32.mrf.mxu0
        %v1604 = vadd.f32 %v1314, %v1603
        %v1605 = vpop.f32.mrf.mxu0
        %v1606 = vadd.f32 %v1319, %v1605
        %v1607 = vpop.f32.mrf.mxu0
        %v1608 = vadd.f32 %v1319, %v1607
        %1609 = vmatprep.mubr.bf16.mxu0 0
        %1610 = vmatmul.mubr.bf16.gmra.mxu0 %v1536
        %v1611 = vpop.f32.mrf.mxu0
        %v1612 = vadd.f32 %v1324, %v1611
        %v1613 = vpop.f32.mrf.mxu0
        %v1614 = vadd.f32 %v1324, %v1613
        %v1615 = vpop.f32.mrf.mxu0
        %v1616 = vadd.f32 %v1329, %v1615
        %v1617 = vpop.f32.mrf.mxu0
        %v1618 = vadd.f32 %v1329, %v1617
        %1619 = vmatprep.mubr.bf16.mxu0 0
        %1620 = vmatmul.mubr.bf16.gmra.mxu0 %v1537
        %v1621 = vpop.f32.mrf.mxu0
        %v1622 = vadd.f32 %v1334, %v1621
        %v1623 = vpop.f32.mrf.mxu0
        %v1624 = vadd.f32 %v1334, %v1623
        %v1625 = vpop.f32.mrf.mxu0
        %v1626 = vadd.f32 %v1339, %v1625
        %v1627 = vpop.f32.mrf.mxu0
        %v1628 = vadd.f32 %v1339, %v1627
        %1629 = vmatprep.mubr.bf16.mxu0 0
        %1630 = vmatmul.mubr.bf16.gmra.mxu0 %v1538
        %v1631 = vpop.f32.mrf.mxu0
        %v1632 = vadd.f32 %v1344, %v1631
        %v1633 = vpop.f32.mrf.mxu0
        %v1634 = vadd.f32 %v1344, %v1633
        %v1635 = vpop.f32.mrf.mxu0
        %v1636 = vadd.f32 %v1349, %v1635
        %v1637 = vpop.f32.mrf.mxu0
        %v1638 = vadd.f32 %v1349, %v1637
        %1639 = vmatprep.mubr.bf16.mxu0 0
        %1640 = vmatmul.mubr.bf16.gmra.mxu0 %v1539
        %v1641 = vpop.f32.mrf.mxu0
        %v1642 = vadd.f32 %v1354, %v1641
        %v1643 = vpop.f32.mrf.mxu0
        %v1644 = vadd.f32 %v1354, %v1643
        %v1645 = vpop.f32.mrf.mxu0
        %v1646 = vadd.f32 %v1359, %v1645
        %v1647 = vpop.f32.mrf.mxu0
        %v1648 = vadd.f32 %v1359, %v1647
        %1649 = vmatprep.mubr.bf16.mxu0 0
        %1650 = vmatmul.mubr.bf16.gmra.mxu0 %v1540
        %v1651 = vpop.f32.mrf.mxu0
        %v1652 = vadd.f32 %v1364, %v1651
        %v1653 = vpop.f32.mrf.mxu0
        %v1654 = vadd.f32 %v1364, %v1653
        %v1655 = vpop.f32.mrf.mxu0
        %v1656 = vadd.f32 %v1369, %v1655
        %v1657 = vpop.f32.mrf.mxu0
        %v1658 = vadd.f32 %v1369, %v1657
        %1659 = vmatprep.mubr.bf16.mxu0 0
        %1660 = vmatmul.mubr.bf16.gmra.mxu0 %v1541
        %v1661 = vpop.f32.mrf.mxu0
        %v1662 = vadd.f32 %v1374, %v1661
        %v1663 = vpop.f32.mrf.mxu0
        %v1664 = vadd.f32 %v1374, %v1663
        %v1665 = vpop.f32.mrf.mxu0
        %v1666 = vadd.f32 %v1379, %v1665
        %v1667 = vpop.f32.mrf.mxu0
        %v1668 = vadd.f32 %v1379, %v1667
        %1669 = vmatprep.mubr.bf16.mxu0 0
        %1670 = vmatmul.mubr.bf16.gmra.mxu0 %v1542
        %v1671 = vpop.f32.mrf.mxu0
        %v1672 = vadd.f32 %v1384, %v1671
        %v1673 = vpop.f32.mrf.mxu0
        %v1674 = vadd.f32 %v1384, %v1673
        %v1675 = vpop.f32.mrf.mxu0
        %v1676 = vadd.f32 %v1389, %v1675
        %v1677 = vpop.f32.mrf.mxu0
        %v1678 = vadd.f32 %v1389, %v1677
        %1679 = vmatprep.mubr.bf16.mxu0 0
        %1680 = vmatmul.mubr.bf16.gmra.mxu0 %v1543
        %v1681 = vpop.f32.mrf.mxu0
        %v1682 = vadd.f32 %v1394, %v1681
        %v1683 = vpop.f32.mrf.mxu0
        %v1684 = vadd.f32 %v1394, %v1683
        %v1685 = vpop.f32.mrf.mxu0
        %v1686 = vadd.f32 %v1399, %v1685
        %v1687 = vpop.f32.mrf.mxu0
        %v1688 = vadd.f32 %v1399, %v1687
        %1689 = vmatprep.mubr.bf16.mxu0 0
        %1690 = vmatmul.mubr.bf16.gmra.mxu0 %v1544
        %v1691 = vpop.f32.mrf.mxu0
        %v1692 = vadd.f32 %v1404, %v1691
        %v1693 = vpop.f32.mrf.mxu0
        %v1694 = vadd.f32 %v1404, %v1693
        %v1695 = vpop.f32.mrf.mxu0
        %v1696 = vadd.f32 %v1409, %v1695
        %v1697 = vpop.f32.mrf.mxu0
        %v1698 = vadd.f32 %v1409, %v1697
        %1699 = vmatprep.mubr.bf16.mxu0 0
        %1700 = vmatmul.mubr.bf16.gmra.mxu0 %v1545
        %v1701 = vpop.f32.mrf.mxu0
        %v1702 = vadd.f32 %v1414, %v1701
        %v1703 = vpop.f32.mrf.mxu0
        %v1704 = vadd.f32 %v1414, %v1703
        %v1705 = vpop.f32.mrf.mxu0
        %v1706 = vadd.f32 %v1419, %v1705
        %v1707 = vpop.f32.mrf.mxu0
        %v1708 = vadd.f32 %v1419, %v1707
        %1709 = vmatprep.mubr.bf16.mxu0 0
        %1710 = vmatmul.mubr.bf16.gmra.mxu0 %v1546
        %v1711 = vpop.f32.mrf.mxu0
        %v1712 = vadd.f32 %v1424, %v1711
        %v1713 = vpop.f32.mrf.mxu0
        %v1714 = vadd.f32 %v1424, %v1713
        %v1715 = vpop.f32.mrf.mxu0
        %v1716 = vadd.f32 %v1429, %v1715
        %v1717 = vpop.f32.mrf.mxu0
        %v1718 = vadd.f32 %v1429, %v1717
        %1719 = vmatprep.mubr.bf16.mxu0 0
        %1720 = vmatmul.mubr.bf16.gmra.mxu0 %v1547
        %v1721 = vpop.f32.mrf.mxu0
        %v1722 = vadd.f32 %v1434, %v1721
        %v1723 = vpop.f32.mrf.mxu0
        %v1724 = vadd.f32 %v1434, %v1723
        %v1725 = vpop.f32.mrf.mxu0
        %v1726 = vadd.f32 %v1439, %v1725
        %v1727 = vpop.f32.mrf.mxu0
        %v1728 = vadd.f32 %v1439, %v1727
        %1729 = vmatprep.mubr.bf16.mxu0 0
        %1730 = vmatmul.mubr.bf16.gmra.mxu0 %v1548
        %v1731 = vpop.f32.mrf.mxu0
        %v1732 = vadd.f32 %v1444, %v1731
        %v1733 = vpop.f32.mrf.mxu0
        %v1734 = vadd.f32 %v1444, %v1733
        %v1735 = vpop.f32.mrf.mxu0
        %v1736 = vadd.f32 %v1449, %v1735
        %v1737 = vpop.f32.mrf.mxu0
        %v1738 = vadd.f32 %v1449, %v1737
        %1739 = vmatprep.mubr.bf16.mxu0 0
        %1740 = vmatmul.mubr.bf16.gmra.mxu0 %v1549
        %v1741 = vpop.f32.mrf.mxu0
        %v1742 = vadd.f32 %v1454, %v1741
        %v1743 = vpop.f32.mrf.mxu0
        %v1744 = vadd.f32 %v1454, %v1743
        %v1745 = vpop.f32.mrf.mxu0
        %v1746 = vadd.f32 %v1459, %v1745
        %v1747 = vpop.f32.mrf.mxu0
        %v1748 = vadd.f32 %v1459, %v1747
        %1749 = vmatprep.mubr.bf16.mxu0 0
        %1750 = vmatmul.mubr.bf16.gmra.mxu0 %v1550
        %v1751 = vpop.f32.mrf.mxu0
        %v1752 = vadd.f32 %v1464, %v1751
        %v1753 = vpop.f32.mrf.mxu0
        %v1754 = vadd.f32 %v1464, %v1753
        %v1755 = vpop.f32.mrf.mxu0
        %v1756 = vadd.f32 %v1469, %v1755
        %v1757 = vpop.f32.mrf.mxu0
        %v1758 = vadd.f32 %v1469, %v1757
        %1759 = vdwg.mxu0
        %1760 = vmatprep.subr.bf16.mxu0 %v1278
        %1761 = vmatpush1.bf16.msra.mxu0 %v1277
        %1762 = vmatprep.subr.bf16.mxu0 %v1274
        %1763 = vmatpush1.bf16.msra.mxu0 %v1273
        %1764 = vmatprep.subr.bf16.mxu0 %v1270
        %1765 = vmatpush1.bf16.msra.mxu0 %v1269
        %1766 = vmatprep.subr.bf16.mxu0 %v1266
        %1767 = vmatpush1.bf16.msra.mxu0 %v1265
        %1768 = vmatprep.subr.bf16.mxu0 %v1262
        %1769 = vmatpush1.bf16.msra.mxu0 %v1261
        %1770 = vmatprep.subr.bf16.mxu0 %v1258
        %1771 = vmatpush1.bf16.msra.mxu0 %v1257
        %1772 = vmatprep.subr.bf16.mxu0 %v1254
        %1773 = vmatpush1.bf16.msra.mxu0 %v1253
        %1774 = vmatprep.subr.bf16.mxu0 %v1250
        %1775 = vmatpush1.bf16.msra.mxu0 %v1249
        %1776 = vmatprep.subr.bf16.mxu0 0
        %1777 = vmatpush2.bf16.msra.mxu0 0
        %1778 = vmatprep.subr.bf16.mxu0 0
        %1779 = vmatpush2.bf16.msra.mxu0 0
        %1780 = vmatprep.subr.bf16.mxu0 0
        %1781 = vmatpush2.bf16.msra.mxu0 0
        %1782 = vmatprep.subr.bf16.mxu0 0
        %1783 = vmatpush2.bf16.msra.mxu0 0
        %1784 = vmatprep.subr.bf16.mxu0 0
        %1785 = vmatpush2.bf16.msra.mxu0 0
        %1786 = vmatprep.subr.bf16.mxu0 0
        %1787 = vmatpush2.bf16.msra.mxu0 0
        %1788 = vmatprep.subr.bf16.mxu0 0
        %1789 = vmatpush2.bf16.msra.mxu0 0
        %1790 = vmatprep.subr.bf16.mxu0 0
        %1791 = vmatpush2.bf16.msra.mxu0 0
        %1792 = vmatprep.mubr.bf16.mxu0 0
        %1793 = vmatmul.mubr.bf16.gmra.mxu0 %v1535
        %v1794 = vpop.f32.mrf.mxu0
        %v1795 = vadd.f32 %v1314, %v1794
        %v1796 = vpop.f32.mrf.mxu0
        %v1797 = vadd.f32 %v1314, %v1796
        %v1798 = vpop.f32.mrf.mxu0
        %v1799 = vadd.f32 %v1319, %v1798
        %v1800 = vpop.f32.mrf.mxu0
        %v1801 = vadd.f32 %v1319, %v1800
        %1802 = vmatprep.mubr.bf16.mxu0 0
        %1803 = vmatmul.mubr.bf16.gmra.mxu0 %v1536
        %v1804 = vpop.f32.mrf.mxu0
        %v1805 = vadd.f32 %v1324, %v1804
        %v1806 = vpop.f32.mrf.mxu0
        %v1807 = vadd.f32 %v1324, %v1806
        %v1808 = vpop.f32.mrf.mxu0
        %v1809 = vadd.f32 %v1329, %v1808
        %v1810 = vpop.f32.mrf.mxu0
        %v1811 = vadd.f32 %v1329, %v1810
        %1812 = vmatprep.mubr.bf16.mxu0 0
        %1813 = vmatmul.mubr.bf16.gmra.mxu0 %v1537
        %v1814 = vpop.f32.mrf.mxu0
        %v1815 = vadd.f32 %v1334, %v1814
        %v1816 = vpop.f32.mrf.mxu0
        %v1817 = vadd.f32 %v1334, %v1816
        %v1818 = vpop.f32.mrf.mxu0
        %v1819 = vadd.f32 %v1339, %v1818
        %v1820 = vpop.f32.mrf.mxu0
        %v1821 = vadd.f32 %v1339, %v1820
        %1822 = vmatprep.mubr.bf16.mxu0 0
        %1823 = vmatmul.mubr.bf16.gmra.mxu0 %v1538
        %v1824 = vpop.f32.mrf.mxu0
        %v1825 = vadd.f32 %v1344, %v1824
        %v1826 = vpop.f32.mrf.mxu0
        %v1827 = vadd.f32 %v1344, %v1826
        %v1828 = vpop.f32.mrf.mxu0
        %v1829 = vadd.f32 %v1349, %v1828
        %v1830 = vpop.f32.mrf.mxu0
        %v1831 = vadd.f32 %v1349, %v1830
        %1832 = vmatprep.mubr.bf16.mxu0 0
        %1833 = vmatmul.mubr.bf16.gmra.mxu0 %v1539
        %v1834 = vpop.f32.mrf.mxu0
        %v1835 = vadd.f32 %v1354, %v1834
        %v1836 = vpop.f32.mrf.mxu0
        %v1837 = vadd.f32 %v1354, %v1836
        %v1838 = vpop.f32.mrf.mxu0
        %v1839 = vadd.f32 %v1359, %v1838
        %v1840 = vpop.f32.mrf.mxu0
        %v1841 = vadd.f32 %v1359, %v1840
        %1842 = vmatprep.mubr.bf16.mxu0 0
        %1843 = vmatmul.mubr.bf16.gmra.mxu0 %v1540
        %v1844 = vpop.f32.mrf.mxu0
        %v1845 = vadd.f32 %v1364, %v1844
        %v1846 = vpop.f32.mrf.mxu0
        %v1847 = vadd.f32 %v1364, %v1846
        %v1848 = vpop.f32.mrf.mxu0
        %v1849 = vadd.f32 %v1369, %v1848
        %v1850 = vpop.f32.mrf.mxu0
        %v1851 = vadd.f32 %v1369, %v1850
        %1852 = vmatprep.mubr.bf16.mxu0 0
        %1853 = vmatmul.mubr.bf16.gmra.mxu0 %v1541
        %v1854 = vpop.f32.mrf.mxu0
        %v1855 = vadd.f32 %v1374, %v1854
        %v1856 = vpop.f32.mrf.mxu0
        %v1857 = vadd.f32 %v1374, %v1856
        %v1858 = vpop.f32.mrf.mxu0
        %v1859 = vadd.f32 %v1379, %v1858
        %v1860 = vpop.f32.mrf.mxu0
        %v1861 = vadd.f32 %v1379, %v1860
        %1862 = vmatprep.mubr.bf16.mxu0 0
        %1863 = vmatmul.mubr.bf16.gmra.mxu0 %v1542
        %v1864 = vpop.f32.mrf.mxu0
        %v1865 = vadd.f32 %v1384, %v1864
        %v1866 = vpop.f32.mrf.mxu0
        %v1867 = vadd.f32 %v1384, %v1866
        %v1868 = vpop.f32.mrf.mxu0
        %v1869 = vadd.f32 %v1389, %v1868
        %v1870 = vpop.f32.mrf.mxu0
        %v1871 = vadd.f32 %v1389, %v1870
        %1872 = vmatprep.mubr.bf16.mxu0 0
        %1873 = vmatmul.mubr.bf16.gmra.mxu0 %v1543
        %v1874 = vpop.f32.mrf.mxu0
        %v1875 = vadd.f32 %v1394, %v1874
        %v1876 = vpop.f32.mrf.mxu0
        %v1877 = vadd.f32 %v1394, %v1876
        %v1878 = vpop.f32.mrf.mxu0
        %v1879 = vadd.f32 %v1399, %v1878
        %v1880 = vpop.f32.mrf.mxu0
        %v1881 = vadd.f32 %v1399, %v1880
        %1882 = vmatprep.mubr.bf16.mxu0 0
        %1883 = vmatmul.mubr.bf16.gmra.mxu0 %v1544
        %v1884 = vpop.f32.mrf.mxu0
        %v1885 = vadd.f32 %v1404, %v1884
        %v1886 = vpop.f32.mrf.mxu0
        %v1887 = vadd.f32 %v1404, %v1886
        %v1888 = vpop.f32.mrf.mxu0
        %v1889 = vadd.f32 %v1409, %v1888
        %v1890 = vpop.f32.mrf.mxu0
        %v1891 = vadd.f32 %v1409, %v1890
        %1892 = vmatprep.mubr.bf16.mxu0 0
        %1893 = vmatmul.mubr.bf16.gmra.mxu0 %v1545
        %v1894 = vpop.f32.mrf.mxu0
        %v1895 = vadd.f32 %v1414, %v1894
        %v1896 = vpop.f32.mrf.mxu0
        %v1897 = vadd.f32 %v1414, %v1896
        %v1898 = vpop.f32.mrf.mxu0
        %v1899 = vadd.f32 %v1419, %v1898
        %v1900 = vpop.f32.mrf.mxu0
        %v1901 = vadd.f32 %v1419, %v1900
        %1902 = vmatprep.mubr.bf16.mxu0 0
        %1903 = vmatmul.mubr.bf16.gmra.mxu0 %v1546
        %v1904 = vpop.f32.mrf.mxu0
        %v1905 = vadd.f32 %v1424, %v1904
        %v1906 = vpop.f32.mrf.mxu0
        %v1907 = vadd.f32 %v1424, %v1906
        %v1908 = vpop.f32.mrf.mxu0
        %v1909 = vadd.f32 %v1429, %v1908
        %v1910 = vpop.f32.mrf.mxu0
        %v1911 = vadd.f32 %v1429, %v1910
        %1912 = vmatprep.mubr.bf16.mxu0 0
        %1913 = vmatmul.mubr.bf16.gmra.mxu0 %v1547
        %v1914 = vpop.f32.mrf.mxu0
        %v1915 = vadd.f32 %v1434, %v1914
        %v1916 = vpop.f32.mrf.mxu0
        %v1917 = vadd.f32 %v1434, %v1916
        %v1918 = vpop.f32.mrf.mxu0
        %v1919 = vadd.f32 %v1439, %v1918
        %v1920 = vpop.f32.mrf.mxu0
        %v1921 = vadd.f32 %v1439, %v1920
        %1922 = vmatprep.mubr.bf16.mxu0 0
        %1923 = vmatmul.mubr.bf16.gmra.mxu0 %v1548
        %v1924 = vpop.f32.mrf.mxu0
        %v1925 = vadd.f32 %v1444, %v1924
        %v1926 = vpop.f32.mrf.mxu0
        %v1927 = vadd.f32 %v1444, %v1926
        %v1928 = vpop.f32.mrf.mxu0
        %v1929 = vadd.f32 %v1449, %v1928
        %v1930 = vpop.f32.mrf.mxu0
        %v1931 = vadd.f32 %v1449, %v1930
        %1932 = vmatprep.mubr.bf16.mxu0 0
        %1933 = vmatmul.mubr.bf16.gmra.mxu0 %v1549
        %v1934 = vpop.f32.mrf.mxu0
        %v1935 = vadd.f32 %v1454, %v1934
        %v1936 = vpop.f32.mrf.mxu0
        %v1937 = vadd.f32 %v1454, %v1936
        %v1938 = vpop.f32.mrf.mxu0
        %v1939 = vadd.f32 %v1459, %v1938
        %v1940 = vpop.f32.mrf.mxu0
        %v1941 = vadd.f32 %v1459, %v1940
        %1942 = vmatprep.mubr.bf16.mxu0 0
        %1943 = vmatmul.mubr.bf16.gmra.mxu0 %v1550
        %v1944 = vpop.f32.mrf.mxu0
        %v1945 = vadd.f32 %v1464, %v1944
        %v1946 = vpop.f32.mrf.mxu0
        %v1947 = vadd.f32 %v1464, %v1946
        %v1948 = vpop.f32.mrf.mxu0
        %v1949 = vadd.f32 %v1469, %v1948
        %v1950 = vpop.f32.mrf.mxu0
        %v1951 = vadd.f32 %v1469, %v1950
        %1952 = vdwg.mxu0
        %v1953 = vmax.f32 %v1602, 0.0
        %v1954 = vmax.f32 %v1604, 0.0
        %v1955 = vmax.f32 %v1795, 0.0
        %v1956 = vmax.f32 %v1797, 0.0
        %v1957 = vmax.f32 %v1606, 0.0
        %v1958 = vmax.f32 %v1608, 0.0
        %v1959 = vmax.f32 %v1799, 0.0
        %v1960 = vmax.f32 %v1801, 0.0
        %v1961 = vmax.f32 %v1612, 0.0
        %v1962 = vmax.f32 %v1614, 0.0
        %v1963 = vmax.f32 %v1805, 0.0
        %v1964 = vmax.f32 %v1807, 0.0
        %v1965 = vmax.f32 %v1616, 0.0
        %v1966 = vmax.f32 %v1618, 0.0
        %v1967 = vmax.f32 %v1809, 0.0
        %v1968 = vmax.f32 %v1811, 0.0
        %v1969 = vmax.f32 %v1622, 0.0
        %v1970 = vmax.f32 %v1624, 0.0
        %v1971 = vmax.f32 %v1815, 0.0
        %v1972 = vmax.f32 %v1817, 0.0
        %v1973 = vmax.f32 %v1626, 0.0
        %v1974 = vmax.f32 %v1628, 0.0
        %v1975 = vmax.f32 %v1819, 0.0
        %v1976 = vmax.f32 %v1821, 0.0
        %v1977 = vmax.f32 %v1632, 0.0
        %v1978 = vmax.f32 %v1634, 0.0
        %v1979 = vmax.f32 %v1825, 0.0
        %v1980 = vmax.f32 %v1827, 0.0
        %v1981 = vmax.f32 %v1636, 0.0
        %v1982 = vmax.f32 %v1638, 0.0
        %v1983 = vmax.f32 %v1829, 0.0
        %v1984 = vmax.f32 %v1831, 0.0
        %v1985 = vmax.f32 %v1642, 0.0
        %v1986 = vmax.f32 %v1644, 0.0
        %v1987 = vmax.f32 %v1835, 0.0
        %v1988 = vmax.f32 %v1837, 0.0
        %v1989 = vmax.f32 %v1646, 0.0
        %v1990 = vmax.f32 %v1648, 0.0
        %v1991 = vmax.f32 %v1839, 0.0
        %v1992 = vmax.f32 %v1841, 0.0
        %v1993 = vmax.f32 %v1652, 0.0
        %v1994 = vmax.f32 %v1654, 0.0
        %v1995 = vmax.f32 %v1845, 0.0
        %v1996 = vmax.f32 %v1847, 0.0
        %v1997 = vmax.f32 %v1656, 0.0
        %v1998 = vmax.f32 %v1658, 0.0
        %v1999 = vmax.f32 %v1849, 0.0
        %v2000 = vmax.f32 %v1851, 0.0
        %v2001 = vmax.f32 %v1662, 0.0
        %v2002 = vmax.f32 %v1664, 0.0
        %v2003 = vmax.f32 %v1855, 0.0
        %v2004 = vmax.f32 %v1857, 0.0
        %v2005 = vmax.f32 %v1666, 0.0
        %v2006 = vmax.f32 %v1668, 0.0
        %v2007 = vmax.f32 %v1859, 0.0
        %v2008 = vmax.f32 %v1861, 0.0
        %v2009 = vmax.f32 %v1672, 0.0
        %v2010 = vmax.f32 %v1674, 0.0
        %v2011 = vmax.f32 %v1865, 0.0
        %v2012 = vmax.f32 %v1867, 0.0
        %v2013 = vmax.f32 %v1676, 0.0
        %v2014 = vmax.f32 %v1678, 0.0
        %v2015 = vmax.f32 %v1869, 0.0
        %v2016 = vmax.f32 %v1871, 0.0
        %v2017 = vmax.f32 %v1682, 0.0
        %v2018 = vmax.f32 %v1684, 0.0
        %v2019 = vmax.f32 %v1875, 0.0
        %v2020 = vmax.f32 %v1877, 0.0
        %v2021 = vmax.f32 %v1686, 0.0
        %v2022 = vmax.f32 %v1688, 0.0
        %v2023 = vmax.f32 %v1879, 0.0
        %v2024 = vmax.f32 %v1881, 0.0
        %v2025 = vmax.f32 %v1692, 0.0
        %v2026 = vmax.f32 %v1694, 0.0
        %v2027 = vmax.f32 %v1885, 0.0
        %v2028 = vmax.f32 %v1887, 0.0
        %v2029 = vmax.f32 %v1696, 0.0
        %v2030 = vmax.f32 %v1698, 0.0
        %v2031 = vmax.f32 %v1889, 0.0
        %v2032 = vmax.f32 %v1891, 0.0
        %v2033 = vmax.f32 %v1702, 0.0
        %v2034 = vmax.f32 %v1704, 0.0
        %v2035 = vmax.f32 %v1895, 0.0
        %v2036 = vmax.f32 %v1897, 0.0
        %v2037 = vmax.f32 %v1706, 0.0
        %v2038 = vmax.f32 %v1708, 0.0
        %v2039 = vmax.f32 %v1899, 0.0
        %v2040 = vmax.f32 %v1901, 0.0
        %v2041 = vmax.f32 %v1712, 0.0
        %v2042 = vmax.f32 %v1714, 0.0
        %v2043 = vmax.f32 %v1905, 0.0
        %v2044 = vmax.f32 %v1907, 0.0
        %v2045 = vmax.f32 %v1716, 0.0
        %v2046 = vmax.f32 %v1718, 0.0
        %v2047 = vmax.f32 %v1909, 0.0
        %v2048 = vmax.f32 %v1911, 0.0
        %v2049 = vmax.f32 %v1722, 0.0
        %v2050 = vmax.f32 %v1724, 0.0
        %v2051 = vmax.f32 %v1915, 0.0
        %v2052 = vmax.f32 %v1917, 0.0
        %v2053 = vmax.f32 %v1726, 0.0
        %v2054 = vmax.f32 %v1728, 0.0
        %v2055 = vmax.f32 %v1919, 0.0
        %v2056 = vmax.f32 %v1921, 0.0
        %v2057 = vmax.f32 %v1732, 0.0
        %v2058 = vmax.f32 %v1734, 0.0
        %v2059 = vmax.f32 %v1925, 0.0
        %v2060 = vmax.f32 %v1927, 0.0
        %v2061 = vmax.f32 %v1736, 0.0
        %v2062 = vmax.f32 %v1738, 0.0
        %v2063 = vmax.f32 %v1929, 0.0
        %v2064 = vmax.f32 %v1931, 0.0
        %v2065 = vmax.f32 %v1742, 0.0
        %v2066 = vmax.f32 %v1744, 0.0
        %v2067 = vmax.f32 %v1935, 0.0
        %v2068 = vmax.f32 %v1937, 0.0
        %v2069 = vmax.f32 %v1746, 0.0
        %v2070 = vmax.f32 %v1748, 0.0
        %v2071 = vmax.f32 %v1939, 0.0
        %v2072 = vmax.f32 %v1941, 0.0
        %v2073 = vmax.f32 %v1752, 0.0
        %v2074 = vmax.f32 %v1754, 0.0
        %v2075 = vmax.f32 %v1945, 0.0
        %v2076 = vmax.f32 %v1947, 0.0
        %v2077 = vmax.f32 %v1756, 0.0
        %v2078 = vmax.f32 %v1758, 0.0
        %v2079 = vmax.f32 %v1949, 0.0
        %v2080 = vmax.f32 %v1951, 0.0
        %v2081 = vld [vmem:[%s7] sm:$0xff]
        %v2082 = vld [vmem:[%s7 + $0x8] sm:$0xff]
        %v2083 = vld [vmem:[%s7 + $0x10] sm:$0xff]
        %v2084 = vld [vmem:[%s7 + $0x18] sm:$0xff]
        %v2085 = vld [vmem:[%s7 + $0x20] sm:$0xff]
        %v2086 = vld [vmem:[%s7 + $0x28] sm:$0xff]
        %v2087 = vld [vmem:[%s7 + $0x30] sm:$0xff]
        %v2088 = vld [vmem:[%s7 + $0x38] sm:$0xff]
        %v2089 = vld [vmem:[%s7 + $0x40] sm:$0xff]
        %v2090 = vld [vmem:[%s7 + $0x48] sm:$0xff]
        %v2091 = vld [vmem:[%s7 + $0x50] sm:$0xff]
        %v2092 = vld [vmem:[%s7 + $0x58] sm:$0xff]
        %v2093 = vld [vmem:[%s7 + $0x60] sm:$0xff]
        %v2094 = vld [vmem:[%s7 + $0x68] sm:$0xff]
        %v2095 = vld [vmem:[%s7 + $0x70] sm:$0xff]
        %v2096 = vld [vmem:[%s7 + $0x78] sm:$0xff]
        %v2097 = vld [vmem:[%s7 + $0x80] sm:$0xff]
        %v2098 = vld [vmem:[%s7 + $0x88] sm:$0xff]
        %v2099 = vld [vmem:[%s7 + $0x90] sm:$0xff]
        %v2100 = vld [vmem:[%s7 + $0x98] sm:$0xff]
        %v2101 = vld [vmem:[%s7 + $0xa0] sm:$0xff]
        %v2102 = vld [vmem:[%s7 + $0xa8] sm:$0xff]
        %v2103 = vld [vmem:[%s7 + $0xb0] sm:$0xff]
        %v2104 = vld [vmem:[%s7 + $0xb8] sm:$0xff]
        %v2105 = vld [vmem:[%s7 + $0xc0] sm:$0xff]
        %v2106 = vld [vmem:[%s7 + $0xc8] sm:$0xff]
        %v2107 = vld [vmem:[%s7 + $0xd0] sm:$0xff]
        %v2108 = vld [vmem:[%s7 + $0xd8] sm:$0xff]
        %v2109 = vld [vmem:[%s7 + $0xe0] sm:$0xff]
        %v2110 = vld [vmem:[%s7 + $0xe8] sm:$0xff]
        %v2111 = vld [vmem:[%s7 + $0xf0] sm:$0xff]
        %v2112 = vld [vmem:[%s7 + $0xf8] sm:$0xff]
        %v2113 = vpack.c.bf16 %v1957, %v1953
        %v2114 = vpack.c.bf16 %v1958, %v1954
        %v2115 = vpack.c.bf16 %v1959, %v1955
        %v2116 = vpack.c.bf16 %v1960, %v1956
        %v2117 = vpack.c.bf16 %v1965, %v1961
        %v2118 = vpack.c.bf16 %v1966, %v1962
        %v2119 = vpack.c.bf16 %v1967, %v1963
        %v2120 = vpack.c.bf16 %v1968, %v1964
        %v2121 = vpack.c.bf16 %v1973, %v1969
        %v2122 = vpack.c.bf16 %v1974, %v1970
        %v2123 = vpack.c.bf16 %v1975, %v1971
        %v2124 = vpack.c.bf16 %v1976, %v1972
        %v2125 = vpack.c.bf16 %v1981, %v1977
        %v2126 = vpack.c.bf16 %v1982, %v1978
        %v2127 = vpack.c.bf16 %v1983, %v1979
        %v2128 = vpack.c.bf16 %v1984, %v1980
        %v2129 = vpack.c.bf16 %v1989, %v1985
        %v2130 = vpack.c.bf16 %v1990, %v1986
        %v2131 = vpack.c.bf16 %v1991, %v1987
        %v2132 = vpack.c.bf16 %v1992, %v1988
        %v2133 = vpack.c.bf16 %v1997, %v1993
        %v2134 = vpack.c.bf16 %v1998, %v1994
        %v2135 = vpack.c.bf16 %v1999, %v1995
        %v2136 = vpack.c.bf16 %v2000, %v1996
        %v2137 = vpack.c.bf16 %v2005, %v2001
        %v2138 = vpack.c.bf16 %v2006, %v2002
        %v2139 = vpack.c.bf16 %v2007, %v2003
        %v2140 = vpack.c.bf16 %v2008, %v2004
        %v2141 = vpack.c.bf16 %v2013, %v2009
        %v2142 = vpack.c.bf16 %v2014, %v2010
        %v2143 = vpack.c.bf16 %v2015, %v2011
        %v2144 = vpack.c.bf16 %v2016, %v2012
        %v2145 = vpack.c.bf16 %v2021, %v2017
        %v2146 = vpack.c.bf16 %v2022, %v2018
        %v2147 = vpack.c.bf16 %v2023, %v2019
        %v2148 = vpack.c.bf16 %v2024, %v2020
        %v2149 = vpack.c.bf16 %v2029, %v2025
        %v2150 = vpack.c.bf16 %v2030, %v2026
        %v2151 = vpack.c.bf16 %v2031, %v2027
        %v2152 = vpack.c.bf16 %v2032, %v2028
        %v2153 = vpack.c.bf16 %v2037, %v2033
        %v2154 = vpack.c.bf16 %v2038, %v2034
        %v2155 = vpack.c.bf16 %v2039, %v2035
        %v2156 = vpack.c.bf16 %v2040, %v2036
        %v2157 = vpack.c.bf16 %v2045, %v2041
        %v2158 = vpack.c.bf16 %v2046, %v2042
        %v2159 = vpack.c.bf16 %v2047, %v2043
        %v2160 = vpack.c.bf16 %v2048, %v2044
        %v2161 = vpack.c.bf16 %v2053, %v2049
        %v2162 = vpack.c.bf16 %v2054, %v2050
        %v2163 = vpack.c.bf16 %v2055, %v2051
        %v2164 = vpack.c.bf16 %v2056, %v2052
        %v2165 = vpack.c.bf16 %v2061, %v2057
        %v2166 = vpack.c.bf16 %v2062, %v2058
        %v2167 = vpack.c.bf16 %v2063, %v2059
        %v2168 = vpack.c.bf16 %v2064, %v2060
        %v2169 = vpack.c.bf16 %v2069, %v2065
        %v2170 = vpack.c.bf16 %v2070, %v2066
        %v2171 = vpack.c.bf16 %v2071, %v2067
        %v2172 = vpack.c.bf16 %v2072, %v2068
        %v2173 = vpack.c.bf16 %v2077, %v2073
        %v2174 = vpack.c.bf16 %v2078, %v2074
        %v2175 = vpack.c.bf16 %v2079, %v2075
        %v2176 = vpack.c.bf16 %v2080, %v2076
        %v2177 = vld [vmem:[%s8] sm:$0xff]
        %v2178 = vld [vmem:[%s8 + $0x8] sm:$0xff]
        %v2179 = vld [vmem:[%s8 + $0x10] sm:$0xff]
        %v2180 = vld [vmem:[%s8 + $0x18] sm:$0xff]
        %v2181 = vld [vmem:[%s8 + $0x20] sm:$0xff]
        %v2182 = vld [vmem:[%s8 + $0x28] sm:$0xff]
        %v2183 = vld [vmem:[%s8 + $0x30] sm:$0xff]
        %v2184 = vld [vmem:[%s8 + $0x38] sm:$0xff]
        %v2185 = vld [vmem:[%s8 + $0x40] sm:$0xff]
        %v2186 = vld [vmem:[%s8 + $0x48] sm:$0xff]
        %v2187 = vld [vmem:[%s8 + $0x50] sm:$0xff]
        %v2188 = vld [vmem:[%s8 + $0x58] sm:$0xff]
        %v2189 = vld [vmem:[%s8 + $0x60] sm:$0xff]
        %v2190 = vld [vmem:[%s8 + $0x68] sm:$0xff]
        %v2191 = vld [vmem:[%s8 + $0x70] sm:$0xff]
        %v2192 = vld [vmem:[%s8 + $0x78] sm:$0xff]
        %v2193 = vld [vmem:[%s8 + $0x80] sm:$0xff]
        %v2194 = vld [vmem:[%s8 + $0x88] sm:$0xff]
        %v2195 = vld [vmem:[%s8 + $0x90] sm:$0xff]
        %v2196 = vld [vmem:[%s8 + $0x98] sm:$0xff]
        %v2197 = vld [vmem:[%s8 + $0xa0] sm:$0xff]
        %v2198 = vld [vmem:[%s8 + $0xa8] sm:$0xff]
        %v2199 = vld [vmem:[%s8 + $0xb0] sm:$0xff]
        %v2200 = vld [vmem:[%s8 + $0xb8] sm:$0xff]
        %v2201 = vld [vmem:[%s8 + $0xc0] sm:$0xff]
        %v2202 = vld [vmem:[%s8 + $0xc8] sm:$0xff]
        %v2203 = vld [vmem:[%s8 + $0xd0] sm:$0xff]
        %v2204 = vld [vmem:[%s8 + $0xd8] sm:$0xff]
        %v2205 = vld [vmem:[%s8 + $0xe0] sm:$0xff]
        %v2206 = vld [vmem:[%s8 + $0xe8] sm:$0xff]
        %v2207 = vld [vmem:[%s8 + $0xf0] sm:$0xff]
        %v2208 = vld [vmem:[%s8 + $0xf8] sm:$0xff]
        %2210 = vset.pattern.permute.xlu0 0
        %2211 = vperm.xlu0 %2210, %v2177
        %v2212 = vpop.permute.xlu0 %2211
        %2215 = vset.pattern.permute.xlu0 0
        %2216 = vperm.xlu0 %2215, %v2178
        %v2217 = vpop.permute.xlu0 %2216
        %2220 = vset.pattern.permute.xlu0 0
        %2221 = vperm.xlu0 %2220, %v2179
        %v2222 = vpop.permute.xlu0 %2221
        %2225 = vset.pattern.permute.xlu0 0
        %2226 = vperm.xlu0 %2225, %v2180
        %v2227 = vpop.permute.xlu0 %2226
        %2230 = vset.pattern.permute.xlu0 0
        %2231 = vperm.xlu0 %2230, %v2181
        %v2232 = vpop.permute.xlu0 %2231
        %2235 = vset.pattern.permute.xlu0 0
        %2236 = vperm.xlu0 %2235, %v2182
        %v2237 = vpop.permute.xlu0 %2236
        %2240 = vset.pattern.permute.xlu0 0
        %2241 = vperm.xlu0 %2240, %v2183
        %v2242 = vpop.permute.xlu0 %2241
        %2245 = vset.pattern.permute.xlu0 0
        %2246 = vperm.xlu0 %2245, %v2184
        %v2247 = vpop.permute.xlu0 %2246
        %2250 = vset.pattern.permute.xlu0 0
        %2251 = vperm.xlu0 %2250, %v2185
        %v2252 = vpop.permute.xlu0 %2251
        %2255 = vset.pattern.permute.xlu0 0
        %2256 = vperm.xlu0 %2255, %v2186
        %v2257 = vpop.permute.xlu0 %2256
        %2260 = vset.pattern.permute.xlu0 0
        %2261 = vperm.xlu0 %2260, %v2187
        %v2262 = vpop.permute.xlu0 %2261
        %2265 = vset.pattern.permute.xlu0 0
        %2266 = vperm.xlu0 %2265, %v2188
        %v2267 = vpop.permute.xlu0 %2266
        %2270 = vset.pattern.permute.xlu0 0
        %2271 = vperm.xlu0 %2270, %v2189
        %v2272 = vpop.permute.xlu0 %2271
        %2275 = vset.pattern.permute.xlu0 0
        %2276 = vperm.xlu0 %2275, %v2190
        %v2277 = vpop.permute.xlu0 %2276
        %2280 = vset.pattern.permute.xlu0 0
        %2281 = vperm.xlu0 %2280, %v2191
        %v2282 = vpop.permute.xlu0 %2281
        %2285 = vset.pattern.permute.xlu0 0
        %2286 = vperm.xlu0 %2285, %v2192
        %v2287 = vpop.permute.xlu0 %2286
        %2290 = vset.pattern.permute.xlu0 0
        %2291 = vperm.xlu0 %2290, %v2193
        %v2292 = vpop.permute.xlu0 %2291
        %2295 = vset.pattern.permute.xlu0 0
        %2296 = vperm.xlu0 %2295, %v2194
        %v2297 = vpop.permute.xlu0 %2296
        %2300 = vset.pattern.permute.xlu0 0
        %2301 = vperm.xlu0 %2300, %v2195
        %v2302 = vpop.permute.xlu0 %2301
        %2305 = vset.pattern.permute.xlu0 0
        %2306 = vperm.xlu0 %2305, %v2196
        %v2307 = vpop.permute.xlu0 %2306
        %2310 = vset.pattern.permute.xlu0 0
        %2311 = vperm.xlu0 %2310, %v2197
        %v2312 = vpop.permute.xlu0 %2311
        %2315 = vset.pattern.permute.xlu0 0
        %2316 = vperm.xlu0 %2315, %v2198
        %v2317 = vpop.permute.xlu0 %2316
        %2320 = vset.pattern.permute.xlu0 0
        %2321 = vperm.xlu0 %2320, %v2199
        %v2322 = vpop.permute.xlu0 %2321
        %2325 = vset.pattern.permute.xlu0 0
        %2326 = vperm.xlu0 %2325, %v2200
        %v2327 = vpop.permute.xlu0 %2326
        %2330 = vset.pattern.permute.xlu0 0
        %2331 = vperm.xlu0 %2330, %v2201
        %v2332 = vpop.permute.xlu0 %2331
        %2335 = vset.pattern.permute.xlu0 0
        %2336 = vperm.xlu0 %2335, %v2202
        %v2337 = vpop.permute.xlu0 %2336
        %2340 = vset.pattern.permute.xlu0 0
        %2341 = vperm.xlu0 %2340, %v2203
        %v2342 = vpop.permute.xlu0 %2341
        %2345 = vset.pattern.permute.xlu0 0
        %2346 = vperm.xlu0 %2345, %v2204
        %v2347 = vpop.permute.xlu0 %2346
        %2350 = vset.pattern.permute.xlu0 0
        %2351 = vperm.xlu0 %2350, %v2205
        %v2352 = vpop.permute.xlu0 %2351
        %2355 = vset.pattern.permute.xlu0 0
        %2356 = vperm.xlu0 %2355, %v2206
        %v2357 = vpop.permute.xlu0 %2356
        %2360 = vset.pattern.permute.xlu0 0
        %2361 = vperm.xlu0 %2360, %v2207
        %v2362 = vpop.permute.xlu0 %2361
        %2365 = vset.pattern.permute.xlu0 0
        %2366 = vperm.xlu0 %2365, %v2208
        %v2367 = vpop.permute.xlu0 %2366
        %v2401 = vunpack.c.l.b16 %v2081
        %v2402 = vunpack.c.h.b16 %v2081
        %v2403 = vunpack.c.l.b16 %v2082
        %v2404 = vunpack.c.h.b16 %v2082
        %v2405 = vunpack.c.l.b16 %v2083
        %v2406 = vunpack.c.h.b16 %v2083
        %v2407 = vunpack.c.l.b16 %v2084
        %v2408 = vunpack.c.h.b16 %v2084
        %v2409 = vunpack.c.l.b16 %v2085
        %v2410 = vunpack.c.h.b16 %v2085
        %v2411 = vunpack.c.l.b16 %v2086
        %v2412 = vunpack.c.h.b16 %v2086
        %v2413 = vunpack.c.l.b16 %v2087
        %v2414 = vunpack.c.h.b16 %v2087
        %v2415 = vunpack.c.l.b16 %v2088
        %v2416 = vunpack.c.h.b16 %v2088
        %v2417 = vunpack.c.l.b16 %v2089
        %v2418 = vunpack.c.h.b16 %v2089
        %v2419 = vunpack.c.l.b16 %v2090
        %v2420 = vunpack.c.h.b16 %v2090
        %v2421 = vunpack.c.l.b16 %v2091
        %v2422 = vunpack.c.h.b16 %v2091
        %v2423 = vunpack.c.l.b16 %v2092
        %v2424 = vunpack.c.h.b16 %v2092
        %v2425 = vunpack.c.l.b16 %v2093
        %v2426 = vunpack.c.h.b16 %v2093
        %v2427 = vunpack.c.l.b16 %v2094
        %v2428 = vunpack.c.h.b16 %v2094
        %v2429 = vunpack.c.l.b16 %v2095
        %v2430 = vunpack.c.h.b16 %v2095
        %v2431 = vunpack.c.l.b16 %v2096
        %v2432 = vunpack.c.h.b16 %v2096
        %v2433 = vunpack.c.l.b16 %v2097
        %v2434 = vunpack.c.h.b16 %v2097
        %v2435 = vunpack.c.l.b16 %v2098
        %v2436 = vunpack.c.h.b16 %v2098
        %v2437 = vunpack.c.l.b16 %v2099
        %v2438 = vunpack.c.h.b16 %v2099
        %v2439 = vunpack.c.l.b16 %v2100
        %v2440 = vunpack.c.h.b16 %v2100
        %v2441 = vunpack.c.l.b16 %v2101
        %v2442 = vunpack.c.h.b16 %v2101
        %v2443 = vunpack.c.l.b16 %v2102
        %v2444 = vunpack.c.h.b16 %v2102
        %v2445 = vunpack.c.l.b16 %v2103
        %v2446 = vunpack.c.h.b16 %v2103
        %v2447 = vunpack.c.l.b16 %v2104
        %v2448 = vunpack.c.h.b16 %v2104
        %v2449 = vunpack.c.l.b16 %v2105
        %v2450 = vunpack.c.h.b16 %v2105
        %v2451 = vunpack.c.l.b16 %v2106
        %v2452 = vunpack.c.h.b16 %v2106
        %v2453 = vunpack.c.l.b16 %v2107
        %v2454 = vunpack.c.h.b16 %v2107
        %v2455 = vunpack.c.l.b16 %v2108
        %v2456 = vunpack.c.h.b16 %v2108
        %v2457 = vunpack.c.l.b16 %v2109
        %v2458 = vunpack.c.h.b16 %v2109
        %v2459 = vunpack.c.l.b16 %v2110
        %v2460 = vunpack.c.h.b16 %v2110
        %v2461 = vunpack.c.l.b16 %v2111
        %v2462 = vunpack.c.h.b16 %v2111
        %v2463 = vunpack.c.l.b16 %v2112
        %v2464 = vunpack.c.h.b16 %v2112
        %v2465 = vpack.c.b16 %v2403, %v2401
        %v2466 = vpack.c.b16 %v2404, %v2402
        %v2467 = vpack.c.b16 %v2407, %v2405
        %v2468 = vpack.c.b16 %v2408, %v2406
        %v2469 = vpack.c.b16 %v2411, %v2409
        %v2470 = vpack.c.b16 %v2412, %v2410
        %v2471 = vpack.c.b16 %v2415, %v2413
        %v2472 = vpack.c.b16 %v2416, %v2414
        %v2473 = vpack.c.b16 %v2419, %v2417
        %v2474 = vpack.c.b16 %v2420, %v2418
        %v2475 = vpack.c.b16 %v2423, %v2421
        %v2476 = vpack.c.b16 %v2424, %v2422
        %v2477 = vpack.c.b16 %v2427, %v2425
        %v2478 = vpack.c.b16 %v2428, %v2426
        %v2479 = vpack.c.b16 %v2431, %v2429
        %v2480 = vpack.c.b16 %v2432, %v2430
        %v2481 = vpack.c.b16 %v2435, %v2433
        %v2482 = vpack.c.b16 %v2436, %v2434
        %v2483 = vpack.c.b16 %v2439, %v2437
        %v2484 = vpack.c.b16 %v2440, %v2438
        %v2485 = vpack.c.b16 %v2443, %v2441
        %v2486 = vpack.c.b16 %v2444, %v2442
        %v2487 = vpack.c.b16 %v2447, %v2445
        %v2488 = vpack.c.b16 %v2448, %v2446
        %v2489 = vpack.c.b16 %v2451, %v2449
        %v2490 = vpack.c.b16 %v2452, %v2450
        %v2491 = vpack.c.b16 %v2455, %v2453
        %v2492 = vpack.c.b16 %v2456, %v2454
        %v2493 = vpack.c.b16 %v2459, %v2457
        %v2494 = vpack.c.b16 %v2460, %v2458
        %v2495 = vpack.c.b16 %v2463, %v2461
        %v2496 = vpack.c.b16 %v2464, %v2462
        %2529 = vmatprep.subr.bf16.mxu0 %v2142
        %2530 = vmatpush1.bf16.msra.mxu0 %v2141
        %2531 = vmatprep.subr.bf16.mxu0 %v2138
        %2532 = vmatpush1.bf16.msra.mxu0 %v2137
        %2533 = vmatprep.subr.bf16.mxu0 %v2134
        %2534 = vmatpush1.bf16.msra.mxu0 %v2133
        %2535 = vmatprep.subr.bf16.mxu0 %v2130
        %2536 = vmatpush1.bf16.msra.mxu0 %v2129
        %2537 = vmatprep.subr.bf16.mxu0 %v2126
        %2538 = vmatpush1.bf16.msra.mxu0 %v2125
        %2539 = vmatprep.subr.bf16.mxu0 %v2122
        %2540 = vmatpush1.bf16.msra.mxu0 %v2121
        %2541 = vmatprep.subr.bf16.mxu0 %v2118
        %2542 = vmatpush1.bf16.msra.mxu0 %v2117
        %2543 = vmatprep.subr.bf16.mxu0 %v2114
        %2544 = vmatpush1.bf16.msra.mxu0 %v2113
        %2545 = vmatprep.subr.bf16.mxu0 %v2174
        %2546 = vmatpush2.bf16.msra.mxu0 %v2173
        %2547 = vmatprep.subr.bf16.mxu0 %v2170
        %2548 = vmatpush2.bf16.msra.mxu0 %v2169
        %2549 = vmatprep.subr.bf16.mxu0 %v2166
        %2550 = vmatpush2.bf16.msra.mxu0 %v2165
        %2551 = vmatprep.subr.bf16.mxu0 %v2162
        %2552 = vmatpush2.bf16.msra.mxu0 %v2161
        %2553 = vmatprep.subr.bf16.mxu0 %v2158
        %2554 = vmatpush2.bf16.msra.mxu0 %v2157
        %2555 = vmatprep.subr.bf16.mxu0 %v2154
        %2556 = vmatpush2.bf16.msra.mxu0 %v2153
        %2557 = vmatprep.subr.bf16.mxu0 %v2150
        %2558 = vmatpush2.bf16.msra.mxu0 %v2149
        %2559 = vmatprep.subr.bf16.mxu0 %v2146
        %2560 = vmatpush2.bf16.msra.mxu0 %v2145
        %2561 = vmatprep.mubr.bf16.mxu0 %v2466
        %2562 = vmatmul.mubr.bf16.gmra.mxu0 %v2465
        %v2563 = vpop.f32.mrf.mxu0
        %v2564 = vadd.f32 %v2212, %v2563
        %v2565 = vpop.f32.mrf.mxu0
        %v2566 = vadd.f32 %v2212, %v2565
        %v2567 = vpop.f32.mrf.mxu0
        %v2568 = vadd.f32 %v2217, %v2567
        %v2569 = vpop.f32.mrf.mxu0
        %v2570 = vadd.f32 %v2217, %v2569
        %2571 = vmatprep.mubr.bf16.mxu0 %v2468
        %2572 = vmatmul.mubr.bf16.gmra.mxu0 %v2467
        %v2573 = vpop.f32.mrf.mxu0
        %v2574 = vadd.f32 %v2222, %v2573
        %v2575 = vpop.f32.mrf.mxu0
        %v2576 = vadd.f32 %v2222, %v2575
        %v2577 = vpop.f32.mrf.mxu0
        %v2578 = vadd.f32 %v2227, %v2577
        %v2579 = vpop.f32.mrf.mxu0
        %v2580 = vadd.f32 %v2227, %v2579
        %2581 = vmatprep.mubr.bf16.mxu0 %v2470
        %2582 = vmatmul.mubr.bf16.gmra.mxu0 %v2469
        %v2583 = vpop.f32.mrf.mxu0
        %v2584 = vadd.f32 %v2232, %v2583
        %v2585 = vpop.f32.mrf.mxu0
        %v2586 = vadd.f32 %v2232, %v2585
        %v2587 = vpop.f32.mrf.mxu0
        %v2588 = vadd.f32 %v2237, %v2587
        %v2589 = vpop.f32.mrf.mxu0
        %v2590 = vadd.f32 %v2237, %v2589
        %2591 = vmatprep.mubr.bf16.mxu0 %v2472
        %2592 = vmatmul.mubr.bf16.gmra.mxu0 %v2471
        %v2593 = vpop.f32.mrf.mxu0
        %v2594 = vadd.f32 %v2242, %v2593
        %v2595 = vpop.f32.mrf.mxu0
        %v2596 = vadd.f32 %v2242, %v2595
        %v2597 = vpop.f32.mrf.mxu0
        %v2598 = vadd.f32 %v2247, %v2597
        %v2599 = vpop.f32.mrf.mxu0
        %v2600 = vadd.f32 %v2247, %v2599
        %2601 = vmatprep.mubr.bf16.mxu0 %v2474
        %2602 = vmatmul.mubr.bf16.gmra.mxu0 %v2473
        %v2603 = vpop.f32.mrf.mxu0
        %v2604 = vadd.f32 %v2252, %v2603
        %v2605 = vpop.f32.mrf.mxu0
        %v2606 = vadd.f32 %v2252, %v2605
        %v2607 = vpop.f32.mrf.mxu0
        %v2608 = vadd.f32 %v2257, %v2607
        %v2609 = vpop.f32.mrf.mxu0
        %v2610 = vadd.f32 %v2257, %v2609
        %2611 = vmatprep.mubr.bf16.mxu0 %v2476
        %2612 = vmatmul.mubr.bf16.gmra.mxu0 %v2475
        %v2613 = vpop.f32.mrf.mxu0
        %v2614 = vadd.f32 %v2262, %v2613
        %v2615 = vpop.f32.mrf.mxu0
        %v2616 = vadd.f32 %v2262, %v2615
        %v2617 = vpop.f32.mrf.mxu0
        %v2618 = vadd.f32 %v2267, %v2617
        %v2619 = vpop.f32.mrf.mxu0
        %v2620 = vadd.f32 %v2267, %v2619
        %2621 = vmatprep.mubr.bf16.mxu0 %v2478
        %2622 = vmatmul.mubr.bf16.gmra.mxu0 %v2477
        %v2623 = vpop.f32.mrf.mxu0
        %v2624 = vadd.f32 %v2272, %v2623
        %v2625 = vpop.f32.mrf.mxu0
        %v2626 = vadd.f32 %v2272, %v2625
        %v2627 = vpop.f32.mrf.mxu0
        %v2628 = vadd.f32 %v2277, %v2627
        %v2629 = vpop.f32.mrf.mxu0
        %v2630 = vadd.f32 %v2277, %v2629
        %2631 = vmatprep.mubr.bf16.mxu0 %v2480
        %2632 = vmatmul.mubr.bf16.gmra.mxu0 %v2479
        %v2633 = vpop.f32.mrf.mxu0
        %v2634 = vadd.f32 %v2282, %v2633
        %v2635 = vpop.f32.mrf.mxu0
        %v2636 = vadd.f32 %v2282, %v2635
        %v2637 = vpop.f32.mrf.mxu0
        %v2638 = vadd.f32 %v2287, %v2637
        %v2639 = vpop.f32.mrf.mxu0
        %v2640 = vadd.f32 %v2287, %v2639
        %2641 = vmatprep.mubr.bf16.mxu0 %v2482
        %2642 = vmatmul.mubr.bf16.gmra.mxu0 %v2481
        %v2643 = vpop.f32.mrf.mxu0
        %v2644 = vadd.f32 %v2292, %v2643
        %v2645 = vpop.f32.mrf.mxu0
        %v2646 = vadd.f32 %v2292, %v2645
        %v2647 = vpop.f32.mrf.mxu0
        %v2648 = vadd.f32 %v2297, %v2647
        %v2649 = vpop.f32.mrf.mxu0
        %v2650 = vadd.f32 %v2297, %v2649
        %2651 = vmatprep.mubr.bf16.mxu0 %v2484
        %2652 = vmatmul.mubr.bf16.gmra.mxu0 %v2483
        %v2653 = vpop.f32.mrf.mxu0
        %v2654 = vadd.f32 %v2302, %v2653
        %v2655 = vpop.f32.mrf.mxu0
        %v2656 = vadd.f32 %v2302, %v2655
        %v2657 = vpop.f32.mrf.mxu0
        %v2658 = vadd.f32 %v2307, %v2657
        %v2659 = vpop.f32.mrf.mxu0
        %v2660 = vadd.f32 %v2307, %v2659
        %2661 = vmatprep.mubr.bf16.mxu0 %v2486
        %2662 = vmatmul.mubr.bf16.gmra.mxu0 %v2485
        %v2663 = vpop.f32.mrf.mxu0
        %v2664 = vadd.f32 %v2312, %v2663
        %v2665 = vpop.f32.mrf.mxu0
        %v2666 = vadd.f32 %v2312, %v2665
        %v2667 = vpop.f32.mrf.mxu0
        %v2668 = vadd.f32 %v2317, %v2667
        %v2669 = vpop.f32.mrf.mxu0
        %v2670 = vadd.f32 %v2317, %v2669
        %2671 = vmatprep.mubr.bf16.mxu0 %v2488
        %2672 = vmatmul.mubr.bf16.gmra.mxu0 %v2487
        %v2673 = vpop.f32.mrf.mxu0
        %v2674 = vadd.f32 %v2322, %v2673
        %v2675 = vpop.f32.mrf.mxu0
        %v2676 = vadd.f32 %v2322, %v2675
        %v2677 = vpop.f32.mrf.mxu0
        %v2678 = vadd.f32 %v2327, %v2677
        %v2679 = vpop.f32.mrf.mxu0
        %v2680 = vadd.f32 %v2327, %v2679
        %2681 = vmatprep.mubr.bf16.mxu0 %v2490
        %2682 = vmatmul.mubr.bf16.gmra.mxu0 %v2489
        %v2683 = vpop.f32.mrf.mxu0
        %v2684 = vadd.f32 %v2332, %v2683
        %v2685 = vpop.f32.mrf.mxu0
        %v2686 = vadd.f32 %v2332, %v2685
        %v2687 = vpop.f32.mrf.mxu0
        %v2688 = vadd.f32 %v2337, %v2687
        %v2689 = vpop.f32.mrf.mxu0
        %v2690 = vadd.f32 %v2337, %v2689
        %2691 = vmatprep.mubr.bf16.mxu0 %v2492
        %2692 = vmatmul.mubr.bf16.gmra.mxu0 %v2491
        %v2693 = vpop.f32.mrf.mxu0
        %v2694 = vadd.f32 %v2342, %v2693
        %v2695 = vpop.f32.mrf.mxu0
        %v2696 = vadd.f32 %v2342, %v2695
        %v2697 = vpop.f32.mrf.mxu0
        %v2698 = vadd.f32 %v2347, %v2697
        %v2699 = vpop.f32.mrf.mxu0
        %v2700 = vadd.f32 %v2347, %v2699
        %2701 = vmatprep.mubr.bf16.mxu0 %v2494
        %2702 = vmatmul.mubr.bf16.gmra.mxu0 %v2493
        %v2703 = vpop.f32.mrf.mxu0
        %v2704 = vadd.f32 %v2352, %v2703
        %v2705 = vpop.f32.mrf.mxu0
        %v2706 = vadd.f32 %v2352, %v2705
        %v2707 = vpop.f32.mrf.mxu0
        %v2708 = vadd.f32 %v2357, %v2707
        %v2709 = vpop.f32.mrf.mxu0
        %v2710 = vadd.f32 %v2357, %v2709
        %2711 = vmatprep.mubr.bf16.mxu0 %v2496
        %2712 = vmatmul.mubr.bf16.gmra.mxu0 %v2495
        %v2713 = vpop.f32.mrf.mxu0
        %v2714 = vadd.f32 %v2362, %v2713
        %v2715 = vpop.f32.mrf.mxu0
        %v2716 = vadd.f32 %v2362, %v2715
        %v2717 = vpop.f32.mrf.mxu0
        %v2718 = vadd.f32 %v2367, %v2717
        %v2719 = vpop.f32.mrf.mxu0
        %v2720 = vadd.f32 %v2367, %v2719
        %2721 = vdwg.mxu0
        %2722 = vmatprep.subr.bf16.mxu0 %v2144
        %2723 = vmatpush1.bf16.msra.mxu0 %v2143
        %2724 = vmatprep.subr.bf16.mxu0 %v2140
        %2725 = vmatpush1.bf16.msra.mxu0 %v2139
        %2726 = vmatprep.subr.bf16.mxu0 %v2136
        %2727 = vmatpush1.bf16.msra.mxu0 %v2135
        %2728 = vmatprep.subr.bf16.mxu0 %v2132
        %2729 = vmatpush1.bf16.msra.mxu0 %v2131
        %2730 = vmatprep.subr.bf16.mxu0 %v2128
        %2731 = vmatpush1.bf16.msra.mxu0 %v2127
        %2732 = vmatprep.subr.bf16.mxu0 %v2124
        %2733 = vmatpush1.bf16.msra.mxu0 %v2123
        %2734 = vmatprep.subr.bf16.mxu0 %v2120
        %2735 = vmatpush1.bf16.msra.mxu0 %v2119
        %2736 = vmatprep.subr.bf16.mxu0 %v2116
        %2737 = vmatpush1.bf16.msra.mxu0 %v2115
        %2738 = vmatprep.subr.bf16.mxu0 %v2176
        %2739 = vmatpush2.bf16.msra.mxu0 %v2175
        %2740 = vmatprep.subr.bf16.mxu0 %v2172
        %2741 = vmatpush2.bf16.msra.mxu0 %v2171
        %2742 = vmatprep.subr.bf16.mxu0 %v2168
        %2743 = vmatpush2.bf16.msra.mxu0 %v2167
        %2744 = vmatprep.subr.bf16.mxu0 %v2164
        %2745 = vmatpush2.bf16.msra.mxu0 %v2163
        %2746 = vmatprep.subr.bf16.mxu0 %v2160
        %2747 = vmatpush2.bf16.msra.mxu0 %v2159
        %2748 = vmatprep.subr.bf16.mxu0 %v2156
        %2749 = vmatpush2.bf16.msra.mxu0 %v2155
        %2750 = vmatprep.subr.bf16.mxu0 %v2152
        %2751 = vmatpush2.bf16.msra.mxu0 %v2151
        %2752 = vmatprep.subr.bf16.mxu0 %v2148
        %2753 = vmatpush2.bf16.msra.mxu0 %v2147
        %2754 = vmatprep.mubr.bf16.mxu0 %v2466
        %2755 = vmatmul.mubr.bf16.gmra.mxu0 %v2465
        %v2756 = vpop.f32.mrf.mxu0
        %v2757 = vadd.f32 %v2212, %v2756
        %v2758 = vpop.f32.mrf.mxu0
        %v2759 = vadd.f32 %v2212, %v2758
        %v2760 = vpop.f32.mrf.mxu0
        %v2761 = vadd.f32 %v2217, %v2760
        %v2762 = vpop.f32.mrf.mxu0
        %v2763 = vadd.f32 %v2217, %v2762
        %2764 = vmatprep.mubr.bf16.mxu0 %v2468
        %2765 = vmatmul.mubr.bf16.gmra.mxu0 %v2467
        %v2766 = vpop.f32.mrf.mxu0
        %v2767 = vadd.f32 %v2222, %v2766
        %v2768 = vpop.f32.mrf.mxu0
        %v2769 = vadd.f32 %v2222, %v2768
        %v2770 = vpop.f32.mrf.mxu0
        %v2771 = vadd.f32 %v2227, %v2770
        %v2772 = vpop.f32.mrf.mxu0
        %v2773 = vadd.f32 %v2227, %v2772
        %2774 = vmatprep.mubr.bf16.mxu0 %v2470
        %2775 = vmatmul.mubr.bf16.gmra.mxu0 %v2469
        %v2776 = vpop.f32.mrf.mxu0
        %v2777 = vadd.f32 %v2232, %v2776
        %v2778 = vpop.f32.mrf.mxu0
        %v2779 = vadd.f32 %v2232, %v2778
        %v2780 = vpop.f32.mrf.mxu0
        %v2781 = vadd.f32 %v2237, %v2780
        %v2782 = vpop.f32.mrf.mxu0
        %v2783 = vadd.f32 %v2237, %v2782
        %2784 = vmatprep.mubr.bf16.mxu0 %v2472
        %2785 = vmatmul.mubr.bf16.gmra.mxu0 %v2471
        %v2786 = vpop.f32.mrf.mxu0
        %v2787 = vadd.f32 %v2242, %v2786
        %v2788 = vpop.f32.mrf.mxu0
        %v2789 = vadd.f32 %v2242, %v2788
        %v2790 = vpop.f32.mrf.mxu0
        %v2791 = vadd.f32 %v2247, %v2790
        %v2792 = vpop.f32.mrf.mxu0
        %v2793 = vadd.f32 %v2247, %v2792
        %2794 = vmatprep.mubr.bf16.mxu0 %v2474
        %2795 = vmatmul.mubr.bf16.gmra.mxu0 %v2473
        %v2796 = vpop.f32.mrf.mxu0
        %v2797 = vadd.f32 %v2252, %v2796
        %v2798 = vpop.f32.mrf.mxu0
        %v2799 = vadd.f32 %v2252, %v2798
        %v2800 = vpop.f32.mrf.mxu0
        %v2801 = vadd.f32 %v2257, %v2800
        %v2802 = vpop.f32.mrf.mxu0
        %v2803 = vadd.f32 %v2257, %v2802
        %2804 = vmatprep.mubr.bf16.mxu0 %v2476
        %2805 = vmatmul.mubr.bf16.gmra.mxu0 %v2475
        %v2806 = vpop.f32.mrf.mxu0
        %v2807 = vadd.f32 %v2262, %v2806
        %v2808 = vpop.f32.mrf.mxu0
        %v2809 = vadd.f32 %v2262, %v2808
        %v2810 = vpop.f32.mrf.mxu0
        %v2811 = vadd.f32 %v2267, %v2810
        %v2812 = vpop.f32.mrf.mxu0
        %v2813 = vadd.f32 %v2267, %v2812
        %2814 = vmatprep.mubr.bf16.mxu0 %v2478
        %2815 = vmatmul.mubr.bf16.gmra.mxu0 %v2477
        %v2816 = vpop.f32.mrf.mxu0
        %v2817 = vadd.f32 %v2272, %v2816
        %v2818 = vpop.f32.mrf.mxu0
        %v2819 = vadd.f32 %v2272, %v2818
        %v2820 = vpop.f32.mrf.mxu0
        %v2821 = vadd.f32 %v2277, %v2820
        %v2822 = vpop.f32.mrf.mxu0
        %v2823 = vadd.f32 %v2277, %v2822
        %2824 = vmatprep.mubr.bf16.mxu0 %v2480
        %2825 = vmatmul.mubr.bf16.gmra.mxu0 %v2479
        %v2826 = vpop.f32.mrf.mxu0
        %v2827 = vadd.f32 %v2282, %v2826
        %v2828 = vpop.f32.mrf.mxu0
        %v2829 = vadd.f32 %v2282, %v2828
        %v2830 = vpop.f32.mrf.mxu0
        %v2831 = vadd.f32 %v2287, %v2830
        %v2832 = vpop.f32.mrf.mxu0
        %v2833 = vadd.f32 %v2287, %v2832
        %2834 = vmatprep.mubr.bf16.mxu0 %v2482
        %2835 = vmatmul.mubr.bf16.gmra.mxu0 %v2481
        %v2836 = vpop.f32.mrf.mxu0
        %v2837 = vadd.f32 %v2292, %v2836
        %v2838 = vpop.f32.mrf.mxu0
        %v2839 = vadd.f32 %v2292, %v2838
        %v2840 = vpop.f32.mrf.mxu0
        %v2841 = vadd.f32 %v2297, %v2840
        %v2842 = vpop.f32.mrf.mxu0
        %v2843 = vadd.f32 %v2297, %v2842
        %2844 = vmatprep.mubr.bf16.mxu0 %v2484
        %2845 = vmatmul.mubr.bf16.gmra.mxu0 %v2483
        %v2846 = vpop.f32.mrf.mxu0
        %v2847 = vadd.f32 %v2302, %v2846
        %v2848 = vpop.f32.mrf.mxu0
        %v2849 = vadd.f32 %v2302, %v2848
        %v2850 = vpop.f32.mrf.mxu0
        %v2851 = vadd.f32 %v2307, %v2850
        %v2852 = vpop.f32.mrf.mxu0
        %v2853 = vadd.f32 %v2307, %v2852
        %2854 = vmatprep.mubr.bf16.mxu0 %v2486
        %2855 = vmatmul.mubr.bf16.gmra.mxu0 %v2485
        %v2856 = vpop.f32.mrf.mxu0
        %v2857 = vadd.f32 %v2312, %v2856
        %v2858 = vpop.f32.mrf.mxu0
        %v2859 = vadd.f32 %v2312, %v2858
        %v2860 = vpop.f32.mrf.mxu0
        %v2861 = vadd.f32 %v2317, %v2860
        %v2862 = vpop.f32.mrf.mxu0
        %v2863 = vadd.f32 %v2317, %v2862
        %2864 = vmatprep.mubr.bf16.mxu0 %v2488
        %2865 = vmatmul.mubr.bf16.gmra.mxu0 %v2487
        %v2866 = vpop.f32.mrf.mxu0
        %v2867 = vadd.f32 %v2322, %v2866
        %v2868 = vpop.f32.mrf.mxu0
        %v2869 = vadd.f32 %v2322, %v2868
        %v2870 = vpop.f32.mrf.mxu0
        %v2871 = vadd.f32 %v2327, %v2870
        %v2872 = vpop.f32.mrf.mxu0
        %v2873 = vadd.f32 %v2327, %v2872
        %2874 = vmatprep.mubr.bf16.mxu0 %v2490
        %2875 = vmatmul.mubr.bf16.gmra.mxu0 %v2489
        %v2876 = vpop.f32.mrf.mxu0
        %v2877 = vadd.f32 %v2332, %v2876
        %v2878 = vpop.f32.mrf.mxu0
        %v2879 = vadd.f32 %v2332, %v2878
        %v2880 = vpop.f32.mrf.mxu0
        %v2881 = vadd.f32 %v2337, %v2880
        %v2882 = vpop.f32.mrf.mxu0
        %v2883 = vadd.f32 %v2337, %v2882
        %2884 = vmatprep.mubr.bf16.mxu0 %v2492
        %2885 = vmatmul.mubr.bf16.gmra.mxu0 %v2491
        %v2886 = vpop.f32.mrf.mxu0
        %v2887 = vadd.f32 %v2342, %v2886
        %v2888 = vpop.f32.mrf.mxu0
        %v2889 = vadd.f32 %v2342, %v2888
        %v2890 = vpop.f32.mrf.mxu0
        %v2891 = vadd.f32 %v2347, %v2890
        %v2892 = vpop.f32.mrf.mxu0
        %v2893 = vadd.f32 %v2347, %v2892
        %2894 = vmatprep.mubr.bf16.mxu0 %v2494
        %2895 = vmatmul.mubr.bf16.gmra.mxu0 %v2493
        %v2896 = vpop.f32.mrf.mxu0
        %v2897 = vadd.f32 %v2352, %v2896
        %v2898 = vpop.f32.mrf.mxu0
        %v2899 = vadd.f32 %v2352, %v2898
        %v2900 = vpop.f32.mrf.mxu0
        %v2901 = vadd.f32 %v2357, %v2900
        %v2902 = vpop.f32.mrf.mxu0
        %v2903 = vadd.f32 %v2357, %v2902
        %2904 = vmatprep.mubr.bf16.mxu0 %v2496
        %2905 = vmatmul.mubr.bf16.gmra.mxu0 %v2495
        %v2906 = vpop.f32.mrf.mxu0
        %v2907 = vadd.f32 %v2362, %v2906
        %v2908 = vpop.f32.mrf.mxu0
        %v2909 = vadd.f32 %v2362, %v2908
        %v2910 = vpop.f32.mrf.mxu0
        %v2911 = vadd.f32 %v2367, %v2910
        %v2912 = vpop.f32.mrf.mxu0
        %v2913 = vadd.f32 %v2367, %v2912
        %2914 = vdwg.mxu0
        %v2915 = vmax.f32 %v2564, 0.0
        %v2916 = vmax.f32 %v2566, 0.0
        %v2917 = vmax.f32 %v2757, 0.0
        %v2918 = vmax.f32 %v2759, 0.0
        %v2919 = vmax.f32 %v2568, 0.0
        %v2920 = vmax.f32 %v2570, 0.0
        %v2921 = vmax.f32 %v2761, 0.0
        %v2922 = vmax.f32 %v2763, 0.0
        %v2923 = vmax.f32 %v2574, 0.0
        %v2924 = vmax.f32 %v2576, 0.0
        %v2925 = vmax.f32 %v2767, 0.0
        %v2926 = vmax.f32 %v2769, 0.0
        %v2927 = vmax.f32 %v2578, 0.0
        %v2928 = vmax.f32 %v2580, 0.0
        %v2929 = vmax.f32 %v2771, 0.0
        %v2930 = vmax.f32 %v2773, 0.0
        %v2931 = vmax.f32 %v2584, 0.0
        %v2932 = vmax.f32 %v2586, 0.0
        %v2933 = vmax.f32 %v2777, 0.0
        %v2934 = vmax.f32 %v2779, 0.0
        %v2935 = vmax.f32 %v2588, 0.0
        %v2936 = vmax.f32 %v2590, 0.0
        %v2937 = vmax.f32 %v2781, 0.0
        %v2938 = vmax.f32 %v2783, 0.0
        %v2939 = vmax.f32 %v2594, 0.0
        %v2940 = vmax.f32 %v2596, 0.0
        %v2941 = vmax.f32 %v2787, 0.0
        %v2942 = vmax.f32 %v2789, 0.0
        %v2943 = vmax.f32 %v2598, 0.0
        %v2944 = vmax.f32 %v2600, 0.0
        %v2945 = vmax.f32 %v2791, 0.0
        %v2946 = vmax.f32 %v2793, 0.0
        %v2947 = vmax.f32 %v2604, 0.0
        %v2948 = vmax.f32 %v2606, 0.0
        %v2949 = vmax.f32 %v2797, 0.0
        %v2950 = vmax.f32 %v2799, 0.0
        %v2951 = vmax.f32 %v2608, 0.0
        %v2952 = vmax.f32 %v2610, 0.0
        %v2953 = vmax.f32 %v2801, 0.0
        %v2954 = vmax.f32 %v2803, 0.0
        %v2955 = vmax.f32 %v2614, 0.0
        %v2956 = vmax.f32 %v2616, 0.0
        %v2957 = vmax.f32 %v2807, 0.0
        %v2958 = vmax.f32 %v2809, 0.0
        %v2959 = vmax.f32 %v2618, 0.0
        %v2960 = vmax.f32 %v2620, 0.0
        %v2961 = vmax.f32 %v2811, 0.0
        %v2962 = vmax.f32 %v2813, 0.0
        %v2963 = vmax.f32 %v2624, 0.0
        %v2964 = vmax.f32 %v2626, 0.0
        %v2965 = vmax.f32 %v2817, 0.0
        %v2966 = vmax.f32 %v2819, 0.0
        %v2967 = vmax.f32 %v2628, 0.0
        %v2968 = vmax.f32 %v2630, 0.0
        %v2969 = vmax.f32 %v2821, 0.0
        %v2970 = vmax.f32 %v2823, 0.0
        %v2971 = vmax.f32 %v2634, 0.0
        %v2972 = vmax.f32 %v2636, 0.0
        %v2973 = vmax.f32 %v2827, 0.0
        %v2974 = vmax.f32 %v2829, 0.0
        %v2975 = vmax.f32 %v2638, 0.0
        %v2976 = vmax.f32 %v2640, 0.0
        %v2977 = vmax.f32 %v2831, 0.0
        %v2978 = vmax.f32 %v2833, 0.0
        %v2979 = vmax.f32 %v2644, 0.0
        %v2980 = vmax.f32 %v2646, 0.0
        %v2981 = vmax.f32 %v2837, 0.0
        %v2982 = vmax.f32 %v2839, 0.0
        %v2983 = vmax.f32 %v2648, 0.0
        %v2984 = vmax.f32 %v2650, 0.0
        %v2985 = vmax.f32 %v2841, 0.0
        %v2986 = vmax.f32 %v2843, 0.0
        %v2987 = vmax.f32 %v2654, 0.0
        %v2988 = vmax.f32 %v2656, 0.0
        %v2989 = vmax.f32 %v2847, 0.0
        %v2990 = vmax.f32 %v2849, 0.0
        %v2991 = vmax.f32 %v2658, 0.0
        %v2992 = vmax.f32 %v2660, 0.0
        %v2993 = vmax.f32 %v2851, 0.0
        %v2994 = vmax.f32 %v2853, 0.0
        %v2995 = vmax.f32 %v2664, 0.0
        %v2996 = vmax.f32 %v2666, 0.0
        %v2997 = vmax.f32 %v2857, 0.0
        %v2998 = vmax.f32 %v2859, 0.0
        %v2999 = vmax.f32 %v2668, 0.0
        %v3000 = vmax.f32 %v2670, 0.0
        %v3001 = vmax.f32 %v2861, 0.0
        %v3002 = vmax.f32 %v2863, 0.0
        %v3003 = vmax.f32 %v2674, 0.0
        %v3004 = vmax.f32 %v2676, 0.0
        %v3005 = vmax.f32 %v2867, 0.0
        %v3006 = vmax.f32 %v2869, 0.0
        %v3007 = vmax.f32 %v2678, 0.0
        %v3008 = vmax.f32 %v2680, 0.0
        %v3009 = vmax.f32 %v2871, 0.0
        %v3010 = vmax.f32 %v2873, 0.0
        %v3011 = vmax.f32 %v2684, 0.0
        %v3012 = vmax.f32 %v2686, 0.0
        %v3013 = vmax.f32 %v2877, 0.0
        %v3014 = vmax.f32 %v2879, 0.0
        %v3015 = vmax.f32 %v2688, 0.0
        %v3016 = vmax.f32 %v2690, 0.0
        %v3017 = vmax.f32 %v2881, 0.0
        %v3018 = vmax.f32 %v2883, 0.0
        %v3019 = vmax.f32 %v2694, 0.0
        %v3020 = vmax.f32 %v2696, 0.0
        %v3021 = vmax.f32 %v2887, 0.0
        %v3022 = vmax.f32 %v2889, 0.0
        %v3023 = vmax.f32 %v2698, 0.0
        %v3024 = vmax.f32 %v2700, 0.0
        %v3025 = vmax.f32 %v2891, 0.0
        %v3026 = vmax.f32 %v2893, 0.0
        %v3027 = vmax.f32 %v2704, 0.0
        %v3028 = vmax.f32 %v2706, 0.0
        %v3029 = vmax.f32 %v2897, 0.0
        %v3030 = vmax.f32 %v2899, 0.0
        %v3031 = vmax.f32 %v2708, 0.0
        %v3032 = vmax.f32 %v2710, 0.0
        %v3033 = vmax.f32 %v2901, 0.0
        %v3034 = vmax.f32 %v2903, 0.0
        %v3035 = vmax.f32 %v2714, 0.0
        %v3036 = vmax.f32 %v2716, 0.0
        %v3037 = vmax.f32 %v2907, 0.0
        %v3038 = vmax.f32 %v2909, 0.0
        %v3039 = vmax.f32 %v2718, 0.0
        %v3040 = vmax.f32 %v2720, 0.0
        %v3041 = vmax.f32 %v2911, 0.0
        %v3042 = vmax.f32 %v2913, 0.0
        %v3043 = vld [vmem:[%s9] sm:$0xff]
        %v3044 = vld [vmem:[%s9 + $0x8] sm:$0x77]
        %v3045 = vpack.c.bf16 %v2919, %v2915
        %v3046 = vpack.c.bf16 %v2920, %v2916
        %v3047 = vpack.c.bf16 %v2921, %v2917
        %v3048 = vpack.c.bf16 %v2922, %v2918
        %v3049 = vpack.c.bf16 %v2927, %v2923
        %v3050 = vpack.c.bf16 %v2928, %v2924
        %v3051 = vpack.c.bf16 %v2929, %v2925
        %v3052 = vpack.c.bf16 %v2930, %v2926
        %v3053 = vpack.c.bf16 %v2935, %v2931
        %v3054 = vpack.c.bf16 %v2936, %v2932
        %v3055 = vpack.c.bf16 %v2937, %v2933
        %v3056 = vpack.c.bf16 %v2938, %v2934
        %v3057 = vpack.c.bf16 %v2943, %v2939
        %v3058 = vpack.c.bf16 %v2944, %v2940
        %v3059 = vpack.c.bf16 %v2945, %v2941
        %v3060 = vpack.c.bf16 %v2946, %v2942
        %v3061 = vpack.c.bf16 %v2951, %v2947
        %v3062 = vpack.c.bf16 %v2952, %v2948
        %v3063 = vpack.c.bf16 %v2953, %v2949
        %v3064 = vpack.c.bf16 %v2954, %v2950
        %v3065 = vpack.c.bf16 %v2959, %v2955
        %v3066 = vpack.c.bf16 %v2960, %v2956
        %v3067 = vpack.c.bf16 %v2961, %v2957
        %v3068 = vpack.c.bf16 %v2962, %v2958
        %v3069 = vpack.c.bf16 %v2967, %v2963
        %v3070 = vpack.c.bf16 %v2968, %v2964
        %v3071 = vpack.c.bf16 %v2969, %v2965
        %v3072 = vpack.c.bf16 %v2970, %v2966
        %v3073 = vpack.c.bf16 %v2975, %v2971
        %v3074 = vpack.c.bf16 %v2976, %v2972
        %v3075 = vpack.c.bf16 %v2977, %v2973
        %v3076 = vpack.c.bf16 %v2978, %v2974
        %v3077 = vpack.c.bf16 %v2983, %v2979
        %v3078 = vpack.c.bf16 %v2984, %v2980
        %v3079 = vpack.c.bf16 %v2985, %v2981
        %v3080 = vpack.c.bf16 %v2986, %v2982
        %v3081 = vpack.c.bf16 %v2991, %v2987
        %v3082 = vpack.c.bf16 %v2992, %v2988
        %v3083 = vpack.c.bf16 %v2993, %v2989
        %v3084 = vpack.c.bf16 %v2994, %v2990
        %v3085 = vpack.c.bf16 %v2999, %v2995
        %v3086 = vpack.c.bf16 %v3000, %v2996
        %v3087 = vpack.c.bf16 %v3001, %v2997
        %v3088 = vpack.c.bf16 %v3002, %v2998
        %v3089 = vpack.c.bf16 %v3007, %v3003
        %v3090 = vpack.c.bf16 %v3008, %v3004
        %v3091 = vpack.c.bf16 %v3009, %v3005
        %v3092 = vpack.c.bf16 %v3010, %v3006
        %v3093 = vpack.c.bf16 %v3015, %v3011
        %v3094 = vpack.c.bf16 %v3016, %v3012
        %v3095 = vpack.c.bf16 %v3017, %v3013
        %v3096 = vpack.c.bf16 %v3018, %v3014
        %v3097 = vpack.c.bf16 %v3023, %v3019
        %v3098 = vpack.c.bf16 %v3024, %v3020
        %v3099 = vpack.c.bf16 %v3025, %v3021
        %v3100 = vpack.c.bf16 %v3026, %v3022
        %v3101 = vpack.c.bf16 %v3031, %v3027
        %v3102 = vpack.c.bf16 %v3032, %v3028
        %v3103 = vpack.c.bf16 %v3033, %v3029
        %v3104 = vpack.c.bf16 %v3034, %v3030
        %v3105 = vpack.c.bf16 %v3039, %v3035
        %v3106 = vpack.c.bf16 %v3040, %v3036
        %v3107 = vpack.c.bf16 %v3041, %v3037
        %v3108 = vpack.c.bf16 %v3042, %v3038
        %v3109 = vld [vmem:[%s10] sm:$0xff]
        %v3110 = vld [vmem:[%s10 + $0x8] sm:$0x3f]
        %3112 = vset.pattern.permute.xlu0 0
        %3113 = vperm.xlu0 %3112, %v3109
        %v3114 = vpop.permute.xlu0 %3113
        %3117 = vset.pattern.permute.xlu0 0
        %3118 = vperm.xlu0 %3117, %v3110
        %v3119 = vpop.permute.xlu0 %3118
        %v3123 = vunpack.c.l.b16 %v3043
        %v3124 = vunpack.c.h.b16 %v3043
        %v3125 = vunpack.c.l.b16 %v3044
        %v3126 = vunpack.c.h.b16 %v3044
        %v3127 = vpack.c.b16 %v3125, %v3123
        %v3128 = vpack.c.b16 %v3126, %v3124
        %3131 = vmatprep.subr.bf16.mxu0 %v3074
        %3132 = vmatpush1.bf16.msra.mxu0 %v3073
        %3133 = vmatprep.subr.bf16.mxu0 %v3070
        %3134 = vmatpush1.bf16.msra.mxu0 %v3069
        %3135 = vmatprep.subr.bf16.mxu0 %v3066
        %3136 = vmatpush1.bf16.msra.mxu0 %v3065
        %3137 = vmatprep.subr.bf16.mxu0 %v3062
        %3138 = vmatpush1.bf16.msra.mxu0 %v3061
        %3139 = vmatprep.subr.bf16.mxu0 %v3058
        %3140 = vmatpush1.bf16.msra.mxu0 %v3057
        %3141 = vmatprep.subr.bf16.mxu0 %v3054
        %3142 = vmatpush1.bf16.msra.mxu0 %v3053
        %3143 = vmatprep.subr.bf16.mxu0 %v3050
        %3144 = vmatpush1.bf16.msra.mxu0 %v3049
        %3145 = vmatprep.subr.bf16.mxu0 %v3046
        %3146 = vmatpush1.bf16.msra.mxu0 %v3045
        %3147 = vmatprep.subr.bf16.mxu0 %v3106
        %3148 = vmatpush2.bf16.msra.mxu0 %v3105
        %3149 = vmatprep.subr.bf16.mxu0 %v3102
        %3150 = vmatpush2.bf16.msra.mxu0 %v3101
        %3151 = vmatprep.subr.bf16.mxu0 %v3098
        %3152 = vmatpush2.bf16.msra.mxu0 %v3097
        %3153 = vmatprep.subr.bf16.mxu0 %v3094
        %3154 = vmatpush2.bf16.msra.mxu0 %v3093
        %3155 = vmatprep.subr.bf16.mxu0 %v3090
        %3156 = vmatpush2.bf16.msra.mxu0 %v3089
        %3157 = vmatprep.subr.bf16.mxu0 %v3086
        %3158 = vmatpush2.bf16.msra.mxu0 %v3085
        %3159 = vmatprep.subr.bf16.mxu0 %v3082
        %3160 = vmatpush2.bf16.msra.mxu0 %v3081
        %3161 = vmatprep.subr.bf16.mxu0 %v3078
        %3162 = vmatpush2.bf16.msra.mxu0 %v3077
        %3163 = vmatprep.mubr.bf16.mxu0 %v3128
        %3164 = vmatmul.mubr.bf16.gmra.mxu0 %v3127
        %v3165 = vpop.f32.mrf.mxu0
        %v3166 = vadd.f32 %v3114, %v3165
        %v3167 = vpop.f32.mrf.mxu0
        %v3168 = vadd.f32 %v3114, %v3167
        %v3169 = vpop.f32.mrf.mxu0
        %v3170 = vadd.f32 %v3119, %v3169
        %v3171 = vpop.f32.mrf.mxu0
        %v3172 = vadd.f32 %v3119, %v3171
        %3173 = vdwg.mxu0
        %3174 = vmatprep.subr.bf16.mxu0 %v3076
        %3175 = vmatpush1.bf16.msra.mxu0 %v3075
        %3176 = vmatprep.subr.bf16.mxu0 %v3072
        %3177 = vmatpush1.bf16.msra.mxu0 %v3071
        %3178 = vmatprep.subr.bf16.mxu0 %v3068
        %3179 = vmatpush1.bf16.msra.mxu0 %v3067
        %3180 = vmatprep.subr.bf16.mxu0 %v3064
        %3181 = vmatpush1.bf16.msra.mxu0 %v3063
        %3182 = vmatprep.subr.bf16.mxu0 %v3060
        %3183 = vmatpush1.bf16.msra.mxu0 %v3059
        %3184 = vmatprep.subr.bf16.mxu0 %v3056
        %3185 = vmatpush1.bf16.msra.mxu0 %v3055
        %3186 = vmatprep.subr.bf16.mxu0 %v3052
        %3187 = vmatpush1.bf16.msra.mxu0 %v3051
        %3188 = vmatprep.subr.bf16.mxu0 %v3048
        %3189 = vmatpush1.bf16.msra.mxu0 %v3047
        %3190 = vmatprep.subr.bf16.mxu0 %v3108
        %3191 = vmatpush2.bf16.msra.mxu0 %v3107
        %3192 = vmatprep.subr.bf16.mxu0 %v3104
        %3193 = vmatpush2.bf16.msra.mxu0 %v3103
        %3194 = vmatprep.subr.bf16.mxu0 %v3100
        %3195 = vmatpush2.bf16.msra.mxu0 %v3099
        %3196 = vmatprep.subr.bf16.mxu0 %v3096
        %3197 = vmatpush2.bf16.msra.mxu0 %v3095
        %3198 = vmatprep.subr.bf16.mxu0 %v3092
        %3199 = vmatpush2.bf16.msra.mxu0 %v3091
        %3200 = vmatprep.subr.bf16.mxu0 %v3088
        %3201 = vmatpush2.bf16.msra.mxu0 %v3087
        %3202 = vmatprep.subr.bf16.mxu0 %v3084
        %3203 = vmatpush2.bf16.msra.mxu0 %v3083
        %3204 = vmatprep.subr.bf16.mxu0 %v3080
        %3205 = vmatpush2.bf16.msra.mxu0 %v3079
        %3206 = vmatprep.mubr.bf16.mxu0 %v3128
        %3207 = vmatmul.mubr.bf16.gmra.mxu0 %v3127
        %v3208 = vpop.f32.mrf.mxu0
        %v3209 = vadd.f32 %v3114, %v3208
        %v3210 = vpop.f32.mrf.mxu0
        %v3211 = vadd.f32 %v3114, %v3210
        %v3212 = vpop.f32.mrf.mxu0
        %v3213 = vadd.f32 %v3119, %v3212
        %v3214 = vpop.f32.mrf.mxu0
        %v3215 = vadd.f32 %v3119, %v3214
        %3216 = vdwg.mxu0
        %3217 = vst [vmem:[%s380] sm:$0xff] %v3166
        %3218 = vst [vmem:[%s380 + $0x8] sm:$0xff] %v3168
        %3219 = vst [vmem:[%s380 + $0x10] sm:$0xff] %v3209
        %3220 = vst [vmem:[%s380 + $0x18] sm:$0xff] %v3211
        %3221 = vst [vmem:[%s380 + $0x20] sm:$0x3f] %v3170
        %3222 = vst [vmem:[%s380 + $0x28] sm:$0x3f] %v3172
        %3223 = vst [vmem:[%s380 + $0x30] sm:$0x3f] %v3213
        %3224 = vst [vmem:[%s380 + $0x38] sm:$0x3f] %v3215
        %s3225 = sand.u32 %s269, 1
        %s3226 = scalar_lea.sflag [#allocation3], %s3225
        %s3227 = sand.u32 %s269, 1
        %s3228 = smul.addr %s3227, 64
        %s3229 = scalar_lea.vmem [#allocation2], %s3228
        // Predicated region
        $region65: #{mlp_forward.1} parent=63 // pred_check
          %p3230 = pneg %p279
        $region66: #{mlp_forward.1} parent=63 // pred_check_branch
          %3232 = sbr.rel (%p3230) target = $region68
        $region67: #{mlp_forward.1} parent=63 // pred_region
          %s3233 = smul.u32 4, %s25
          %s3235 = ssub.s32 1024, 1024
          %3236 = vsyncadd %s3226, %s3235
          %s3237 = smul.addr %s3233, 128
          %s3238 = scalar_lea.hbm %s11, %s3237
          %s3239 = sshll.u32 %s3229, 4
          %s3240 = int_to_ptr.vmem [resolvable:$true] %s3239
          %3245 = dma.vmem_to_hbm [thread:$0]  %s3240, 1024, %s3238, %s3226, 512, 1024, 32
        $region68: #{mlp_forward.1} parent=63 // pred_fallthru
          _
      $region64: #{mlp_forward.1} parent=5 // pred_fallthru
        _
      %p3246 = scmp.le.s32.totalorder 2, %s20
      // Predicated region
      $region69: #{mlp_forward.1} parent=5 // pred_check
        %p3247 = pneg %p3246
      $region70: #{mlp_forward.1} parent=5 // pred_check_branch
        %3249 = sbr.rel (%p3247) target = $region72
      $region71: #{mlp_forward.1} parent=5 // pred_region
        %s3250 = ssub.s32 %s20, 2
        // Predicated region
        $region73: #{mlp_forward.1} parent=71 // pred_check
          %p3251 = pneg %p285
        $region74: #{mlp_forward.1} parent=71 // pred_check_branch
          %3253 = sbr.rel (%p3251) target = $region76
        $region75: #{mlp_forward.1} parent=71 // pred_region
          %s3254 = sand.u32 %s270, 1
          %s3255 = scalar_lea.sflag [#allocation3], %s3254
          %s3256 = sand.u32 %s270, 1
          %s3257 = smul.addr %s3256, 64
          %s3258 = scalar_lea.vmem [#allocation2], %s3257
          %3259 = dma.done %s3255, 1024
        $region76: #{mlp_forward.1} parent=71 // pred_fallthru
          _
      $region72: #{mlp_forward.1} parent=5 // pred_fallthru
        _
    $region6: #{mlp_forward.1} parent=1 // loop_footer
      %s24 = sadd.s32 1, %s20
    $region7: #{mlp_forward.1} parent=1 // loop_footer_branch
      %19 = sbr.rel target = $region3
    $region8: #{mlp_forward.1} parent=1 // loop_exit
      _
    %3260 = vsyncpa [#allocation3], 1
    %s3261 = scalar_lea.sflag [#allocation3], 1
    %3262 = vsyncpa %s3261, 1

</llo_original>
